<compile_context>
chip_gen: v6e
topology: v6e:2x2x1
jax: 0.10.0
libtpu: 0.0.40
codegen_flags: <defaults>
</compile_context>

<pallas_src>
import functools

import jax
import jax.numpy as jnp
from jax.experimental import pallas as pl
from jax.experimental.pallas import tpu as pltpu


NEG_SLOPE = 0.01  # torch F.leaky_relu default slope


def _round_up(x, m):
    return -(-x // m) * m


def ddqn12_kernel(layer_meta, x_ref, w_ref, b_ref, out_ref):
    """Runs one batch tile through the whole 6-layer MLP.

    layer_meta: static tuple of (row_offset, fan_in, fan_out) describing where
    each layer's weight lives inside the packed bf16 weight buffer `w_ref`.
    Bias for layer k is row k of `b_ref` (f32).
    """
    h = x_ref[...]                                   # (b_tile, in_dim) f32
    last = len(layer_meta) - 1
    for k, (row, fan_in, fan_out) in enumerate(layer_meta):
        w = w_ref[row:row + fan_in, 0:fan_out]       # bf16, static slice
        b = b_ref[k:k + 1, 0:fan_out]                # f32,  static slice
        # bf16 x bf16 on the MXU, f32 accumulation; bias/activations stay f32.
        z = jnp.dot(h.astype(jnp.bfloat16), w,
                    preferred_element_type=jnp.float32) + b
        if k < last:
            h = jnp.where(z > 0, z, NEG_SLOPE * z)   # leaky_relu
        else:
            h = jnp.maximum(z, 0.0)                  # relu (output layer)
    out_ref[...] = h


def pack_params(params):
    """Pack all weights into one bf16 buffer and all biases into one f32 buffer.

    Weights are stacked along rows; the lane (column) dim is zero-padded to the
    widest layer (rounded up to 128).  Returns (w_pack, b_pack, layer_meta).
    """
    n = len(params)
    max_out = _round_up(max(w.shape[1] for w, _ in params), 128)

    rows, layer_meta, off = [], [], 0
    for w, _ in params:
        fan_in, fan_out = w.shape
        layer_meta.append((off, fan_in, fan_out))
        rows.append(jnp.pad(w.astype(jnp.bfloat16),
                            ((0, 0), (0, max_out - fan_out))))
        off += fan_in
    w_pack = jnp.concatenate(rows, axis=0)
    total_rows = _round_up(off, 16)                  # bf16 sublane-tile multiple
    if total_rows != off:
        w_pack = jnp.pad(w_pack, ((0, total_rows - off), (0, 0)))

    b_pack = jnp.zeros((_round_up(n, 8), max_out), jnp.float32)
    for k, (_, b) in enumerate(params):
        b_pack = b_pack.at[k, : b.shape[1]].set(b[0])

    return w_pack, b_pack, tuple(layer_meta)


def ddqn12_forward(x, params, *, b_tile=512):
    """x: (B, input_dim) f32; params: list of (W, b) with W (in, out), b (1, out)."""
    B, in_dim = x.shape
    out_dim = params[-1][0].shape[1]

    # Small batches: one fat grid step (avoids per-step overhead and, when B is
    # already a multiple of 8, the wrapper-side pad + slice entirely).
    if B <= b_tile:
        b_tile = max(8, _round_up(B, 8))
    pad_b = (-B) % b_tile
    x_p = jnp.pad(x, ((0, pad_b), (0, 0))) if pad_b else x
    b_padded = B + pad_b
    grid = (b_padded // b_tile,)

    w_pack, b_pack, layer_meta = pack_params(params)
    kernel = functools.partial(ddqn12_kernel, layer_meta)

    flops = 2 * b_padded * sum(w.shape[0] * w.shape[1] for w, _ in params)
    bytes_accessed = (
        b_padded * in_dim * 4          # x
        + w_pack.size * 2              # bf16 weights (one-time)
        + b_pack.size * 4              # f32 biases (one-time)
        + b_padded * out_dim * 4       # output
    )

    out = pl.pallas_call(
        kernel,
        out_shape=jax.ShapeDtypeStruct((b_padded, out_dim), jnp.float32),
        grid=grid,
        in_specs=[
            # x: batch-tiled, feature dim full (lane axis); auto double-buffered.
            pl.BlockSpec((b_tile, in_dim), lambda i: (i, 0)),
            # Packed weights / biases: same block every step -> VMEM-resident.
            pl.BlockSpec(w_pack.shape, lambda i: (0, 0)),
            pl.BlockSpec(b_pack.shape, lambda i: (0, 0)),
        ],
        out_specs=pl.BlockSpec((b_tile, out_dim), lambda i: (i, 0)),
        compiler_params=pltpu.CompilerParams(
            dimension_semantics=("parallel",),   # shards long grids across v7x TCs
        ),
        cost_estimate=pl.CostEstimate(
            flops=flops, transcendentals=0, bytes_accessed=bytes_accessed
        ),
    )(x_p, w_pack, b_pack)

    return out if pad_b == 0 else out[:B]


def make_params(input_dim, output_dim, key):
    """Deterministic synthetic parameters matching DDQN12.__init__ shapes."""
    dims = [
        (input_dim, 16 * input_dim),
        (16 * input_dim, 8 * input_dim),
        (8 * input_dim, 4 * input_dim),
        (4 * input_dim, 2 * input_dim),
        (2 * input_dim, 1 * input_dim),
        (1 * input_dim, output_dim),
    ]
    params = []
    for fan_in, fan_out in dims:
        kw, kb, key = jax.random.split(key, 3)
        scale = 1.0 / jnp.sqrt(jnp.float32(fan_in))
        w = jax.random.uniform(kw, (fan_in, fan_out), jnp.float32, -scale, scale)
        b = jax.random.uniform(kb, (1, fan_out), jnp.float32, -scale, scale)
        params.append((w, b))
    return params


def reference_forward(x, params):
    """Plain-JAX reference that mirrors the kernel's bf16-operand / f32-accumulate
    numerics (weights and activations quantized to bf16 before each matmul)."""
    h = x
    for i, (w, b) in enumerate(params):
        wq = w.astype(jnp.bfloat16).astype(jnp.float32)
        hq = h.astype(jnp.bfloat16).astype(jnp.float32)
        z = jnp.dot(hq, wq, precision=jax.lax.Precision.HIGHEST) + b
        if i < len(params) - 1:
            h = jnp.where(z > 0, z, NEG_SLOPE * z)
        else:
            h = jnp.maximum(z, 0.0)
    return h


if __name__ == "__main__":
    B = 200          # fits one grid step; multiple of 8 so no pad/slice path
    INPUT_DIM = 16   # state feature size
    OUTPUT_DIM = 8   # number of Q-values (actions)

    key = jax.random.PRNGKey(0)
    kx, kp = jax.random.split(key)

    x = jax.random.normal(kx, (B, INPUT_DIM), dtype=jnp.float32)
    params = make_params(INPUT_DIM, OUTPUT_DIM, kp)

    out = ddqn12_forward(x, params)
    out = jax.block_until_ready(out)

    ref = reference_forward(x, params)
    assert out.shape == (B, OUTPUT_DIM)
    assert jnp.allclose(out, ref, atol=5e-3, rtol=5e-3), "mismatch vs JAX reference"

    print("KERNEL_OK")
</pallas_src>

<mosaic_0001>
module attributes {stable_mosaic.version = 11 : i64} {
  func.func @ddqn12_kernel(%arg0: i32, %arg1: memref<200x16xf32, #tpu.memory_space<vmem>>, %arg2: memref<512x256xbf16, #tpu.memory_space<vmem>>, %arg3: memref<8x256xf32, #tpu.memory_space<vmem>>, %arg4: memref<200x8xf32, #tpu.memory_space<vmem>>) attributes {dimension_semantics = [#tpu.dimension_semantics<parallel>], iteration_bounds = array<i64: 1>, scalar_prefetch = 0 : i64, scratch_operands = 0 : i64, tpu.core_type = #tpu.core_type<tc>, window_params = [{transform_indices = @transform_0, window_bounds = array<i64: 200, 16>}, {pipeline_mode = #tpu.pipeline_mode<synchronous>, transform_indices = @transform_1, window_bounds = array<i64: 512, 256>}, {pipeline_mode = #tpu.pipeline_mode<synchronous>, transform_indices = @transform_2, window_bounds = array<i64: 8, 256>}, {transform_indices = @transform_3, window_bounds = array<i64: 200, 8>}]} {
    %c0 = arith.constant 0 : index
    %c0_0 = arith.constant 0 : index
    %0 = vector.load %arg1[%c0, %c0_0] : memref<200x16xf32, #tpu.memory_space<vmem>>, vector<200x16xf32>
    %c0_1 = arith.constant 0 : index
    %c0_2 = arith.constant 0 : index
    %1 = vector.load %arg2[%c0_1, %c0_2] : memref<512x256xbf16, #tpu.memory_space<vmem>>, vector<16x256xbf16>
    %c0_3 = arith.constant 0 : index
    %c0_4 = arith.constant 0 : index
    %2 = vector.load %arg3[%c0_3, %c0_4] : memref<8x256xf32, #tpu.memory_space<vmem>>, vector<1x256xf32>
    %3 = arith.truncf %0 : vector<200x16xf32> to vector<200x16xbf16>
    %cst = arith.constant dense<0.000000e+00> : vector<200x256xf32>
    %4 = tpu.matmul %3, %1, %cst {dimension_numbers = #tpu.dot_dimension_numbers<[1], [0], [0], [1], [0, 0, 1, 1], [], []>} : vector<200x16xbf16>, vector<16x256xbf16>, vector<200x256xf32> -> vector<200x256xf32>
    %5 = vector.broadcast %2 : vector<1x256xf32> to vector<200x256xf32>
    %6 = arith.addf %4, %5 : vector<200x256xf32>
    %cst_5 = arith.constant 0.000000e+00 : f32
    %7 = vector.broadcast %cst_5 : f32 to vector<200x256xf32>
    %8 = arith.cmpf ogt, %6, %7 : vector<200x256xf32>
    %cst_6 = arith.constant 0.00999999977 : f32
    %9 = vector.broadcast %cst_6 : f32 to vector<200x256xf32>
    %10 = arith.mulf %9, %6 : vector<200x256xf32>
    %11 = arith.select %8, %6, %10 : vector<200x256xi1>, vector<200x256xf32>
    %c16 = arith.constant 16 : index
    %c0_7 = arith.constant 0 : index
    %12 = vector.load %arg2[%c16, %c0_7] : memref<512x256xbf16, #tpu.memory_space<vmem>>, vector<256x128xbf16>
    %c1 = arith.constant 1 : index
    %c0_8 = arith.constant 0 : index
    %13 = vector.load %arg3[%c1, %c0_8] : memref<8x256xf32, #tpu.memory_space<vmem>>, vector<1x128xf32>
    %14 = arith.truncf %11 : vector<200x256xf32> to vector<200x256xbf16>
    %cst_9 = arith.constant dense<0.000000e+00> : vector<200x128xf32>
    %15 = tpu.matmul %14, %12, %cst_9 {dimension_numbers = #tpu.dot_dimension_numbers<[1], [0], [0], [1], [0, 0, 1, 1], [], []>} : vector<200x256xbf16>, vector<256x128xbf16>, vector<200x128xf32> -> vector<200x128xf32>
    %16 = vector.broadcast %13 : vector<1x128xf32> to vector<200x128xf32>
    %17 = arith.addf %15, %16 : vector<200x128xf32>
    %cst_10 = arith.constant 0.000000e+00 : f32
    %18 = vector.broadcast %cst_10 : f32 to vector<200x128xf32>
    %19 = arith.cmpf ogt, %17, %18 : vector<200x128xf32>
    %cst_11 = arith.constant 0.00999999977 : f32
    %20 = vector.broadcast %cst_11 : f32 to vector<200x128xf32>
    %21 = arith.mulf %20, %17 : vector<200x128xf32>
    %22 = arith.select %19, %17, %21 : vector<200x128xi1>, vector<200x128xf32>
    %c272 = arith.constant 272 : index
    %c0_12 = arith.constant 0 : index
    %23 = vector.load %arg2[%c272, %c0_12] : memref<512x256xbf16, #tpu.memory_space<vmem>>, vector<128x64xbf16>
    %c2 = arith.constant 2 : index
    %c0_13 = arith.constant 0 : index
    %24 = vector.load %arg3[%c2, %c0_13] : memref<8x256xf32, #tpu.memory_space<vmem>>, vector<1x64xf32>
    %25 = arith.truncf %22 : vector<200x128xf32> to vector<200x128xbf16>
    %cst_14 = arith.constant dense<0.000000e+00> : vector<200x64xf32>
    %26 = tpu.matmul %25, %23, %cst_14 {dimension_numbers = #tpu.dot_dimension_numbers<[1], [0], [0], [1], [0, 0, 1, 1], [], []>} : vector<200x128xbf16>, vector<128x64xbf16>, vector<200x64xf32> -> vector<200x64xf32>
    %27 = vector.broadcast %24 : vector<1x64xf32> to vector<200x64xf32>
    %28 = arith.addf %26, %27 : vector<200x64xf32>
    %cst_15 = arith.constant 0.000000e+00 : f32
    %29 = vector.broadcast %cst_15 : f32 to vector<200x64xf32>
    %30 = arith.cmpf ogt, %28, %29 : vector<200x64xf32>
    %cst_16 = arith.constant 0.00999999977 : f32
    %31 = vector.broadcast %cst_16 : f32 to vector<200x64xf32>
    %32 = arith.mulf %31, %28 : vector<200x64xf32>
    %33 = arith.select %30, %28, %32 : vector<200x64xi1>, vector<200x64xf32>
    %c400 = arith.constant 400 : index
    %c0_17 = arith.constant 0 : index
    %34 = vector.load %arg2[%c400, %c0_17] : memref<512x256xbf16, #tpu.memory_space<vmem>>, vector<64x32xbf16>
    %c3 = arith.constant 3 : index
    %c0_18 = arith.constant 0 : index
    %35 = vector.load %arg3[%c3, %c0_18] : memref<8x256xf32, #tpu.memory_space<vmem>>, vector<1x32xf32>
    %36 = arith.truncf %33 : vector<200x64xf32> to vector<200x64xbf16>
    %cst_19 = arith.constant dense<0.000000e+00> : vector<200x32xf32>
    %37 = tpu.matmul %36, %34, %cst_19 {dimension_numbers = #tpu.dot_dimension_numbers<[1], [0], [0], [1], [0, 0, 1, 1], [], []>} : vector<200x64xbf16>, vector<64x32xbf16>, vector<200x32xf32> -> vector<200x32xf32>
    %38 = vector.broadcast %35 : vector<1x32xf32> to vector<200x32xf32>
    %39 = arith.addf %37, %38 : vector<200x32xf32>
    %cst_20 = arith.constant 0.000000e+00 : f32
    %40 = vector.broadcast %cst_20 : f32 to vector<200x32xf32>
    %41 = arith.cmpf ogt, %39, %40 : vector<200x32xf32>
    %cst_21 = arith.constant 0.00999999977 : f32
    %42 = vector.broadcast %cst_21 : f32 to vector<200x32xf32>
    %43 = arith.mulf %42, %39 : vector<200x32xf32>
    %44 = arith.select %41, %39, %43 : vector<200x32xi1>, vector<200x32xf32>
    %c464 = arith.constant 464 : index
    %c0_22 = arith.constant 0 : index
    %45 = vector.load %arg2[%c464, %c0_22] : memref<512x256xbf16, #tpu.memory_space<vmem>>, vector<32x16xbf16>
    %c4 = arith.constant 4 : index
    %c0_23 = arith.constant 0 : index
    %46 = vector.load %arg3[%c4, %c0_23] : memref<8x256xf32, #tpu.memory_space<vmem>>, vector<1x16xf32>
    %47 = arith.truncf %44 : vector<200x32xf32> to vector<200x32xbf16>
    %cst_24 = arith.constant dense<0.000000e+00> : vector<200x16xf32>
    %48 = tpu.matmul %47, %45, %cst_24 {dimension_numbers = #tpu.dot_dimension_numbers<[1], [0], [0], [1], [0, 0, 1, 1], [], []>} : vector<200x32xbf16>, vector<32x16xbf16>, vector<200x16xf32> -> vector<200x16xf32>
    %49 = vector.broadcast %46 : vector<1x16xf32> to vector<200x16xf32>
    %50 = arith.addf %48, %49 : vector<200x16xf32>
    %cst_25 = arith.constant 0.000000e+00 : f32
    %51 = vector.broadcast %cst_25 : f32 to vector<200x16xf32>
    %52 = arith.cmpf ogt, %50, %51 : vector<200x16xf32>
    %cst_26 = arith.constant 0.00999999977 : f32
    %53 = vector.broadcast %cst_26 : f32 to vector<200x16xf32>
    %54 = arith.mulf %53, %50 : vector<200x16xf32>
    %55 = arith.select %52, %50, %54 : vector<200x16xi1>, vector<200x16xf32>
    %c496 = arith.constant 496 : index
    %c0_27 = arith.constant 0 : index
    %56 = vector.load %arg2[%c496, %c0_27] : memref<512x256xbf16, #tpu.memory_space<vmem>>, vector<16x8xbf16>
    %c5 = arith.constant 5 : index
    %c0_28 = arith.constant 0 : index
    %57 = vector.load %arg3[%c5, %c0_28] : memref<8x256xf32, #tpu.memory_space<vmem>>, vector<1x8xf32>
    %58 = arith.truncf %55 : vector<200x16xf32> to vector<200x16xbf16>
    %cst_29 = arith.constant dense<0.000000e+00> : vector<200x8xf32>
    %59 = tpu.matmul %58, %56, %cst_29 {dimension_numbers = #tpu.dot_dimension_numbers<[1], [0], [0], [1], [0, 0, 1, 1], [], []>} : vector<200x16xbf16>, vector<16x8xbf16>, vector<200x8xf32> -> vector<200x8xf32>
    %60 = vector.broadcast %57 : vector<1x8xf32> to vector<200x8xf32>
    %61 = arith.addf %59, %60 : vector<200x8xf32>
    %cst_30 = arith.constant 0.000000e+00 : f32
    %62 = vector.broadcast %cst_30 : f32 to vector<200x8xf32>
    %63 = arith.maximumf %61, %62 : vector<200x8xf32>
    %c0_31 = arith.constant 0 : index
    %c0_32 = arith.constant 0 : index
    %64 = vector.load %arg4[%c0_31, %c0_32] : memref<200x8xf32, #tpu.memory_space<vmem>>, vector<200x8xf32>
    tpu.vector_store %arg4[%c0_31, %c0_32], %63 {strides = array<i32>} : memref<200x8xf32, #tpu.memory_space<vmem>>, vector<200x8xf32>,
    return
  }
  func.func @transform_0(%arg0: i32) -> (i32, i32) {
    %c0_i32 = arith.constant 0 : i32
    %c0_i32_0 = arith.constant 0 : i32
    return %arg0, %c0_i32 : i32, i32
  }
  func.func @transform_1(%arg0: i32) -> (i32, i32) {
    %c0_i32 = arith.constant 0 : i32
    %c0_i32_0 = arith.constant 0 : i32
    %c0_i32_1 = arith.constant 0 : i32
    return %c0_i32, %c0_i32_0 : i32, i32
  }
  func.func @transform_2(%arg0: i32) -> (i32, i32) {
    %c0_i32 = arith.constant 0 : i32
    %c0_i32_0 = arith.constant 0 : i32
    %c0_i32_1 = arith.constant 0 : i32
    return %c0_i32, %c0_i32_0 : i32, i32
  }
  func.func @transform_3(%arg0: i32) -> (i32, i32) {
    %c0_i32 = arith.constant 0 : i32
    %c0_i32_0 = arith.constant 0 : i32
    return %arg0, %c0_i32 : i32, i32
  }
}

</mosaic_0001>

<llo_original>
// kernel: tpu_custom_call.1
$region0: #{tpu_custom_call.1}
  #allocation0 [shape = 'u32[]', space=smem, size = 0x4, offset = 0x4, fixed_abs, tag = 'smem constant byte address 0x4 - core index']
  #allocation1 [shape = 'u32[144,128]{1,0:T(1,128)}', space=vmem, size = 0x12000, scoped, tag = 'internal scratch']
  %s0 = inlined_call_operand.vmem [shape: f32[200,16], index: 0, kind: input, shape index: {}]
  %s1 = inlined_call_operand.hbm [shape: bf16[512,256], index: 1, kind: input, shape index: {}]
  %s2 = inlined_call_operand.vmem [shape: f32[8,256], index: 2, kind: input, shape index: {}]
  %s3 = inlined_call_operand.vmem [shape: f32[200,8], index: 3, kind: output, shape index: {}]
  %s4 = sld [smem:[#allocation0]]
  $region26: #{tpu_custom_call.1} parent=0
    _
  %s6 = ssub.s32 1, %s4
  %s7 = scalar_select 0, %s6, %s4
  $region1: #{tpu_custom_call.1} parent=0
    #allocation2 [shape = 'u8[262144]{0}', space=vmem, size = 0x40000, scoped, tag = 'input window, operand 1, single buffered']
    #allocation3 [shape = 's32[1]{0}', space=sflag, size = 0x4, scoped, tag = 'scoped memory for tpu_custom_call.1']
    %8 = vsyncpa [#allocation3], 0
    // Predicated region
    $region2: #{tpu_custom_call.1} parent=1 // pred_check
      _
    $region3: #{tpu_custom_call.1} parent=1 // pred_check_branch
      %10 = sbr.rel (0) target = $region5
    $region4: #{tpu_custom_call.1} parent=1 // pred_region
      _
    $region5: #{tpu_custom_call.1} parent=1 // pred_fallthru
      _
    // Predicated region
    $region6: #{tpu_custom_call.1} parent=1 // pred_check
      _
    $region7: #{tpu_custom_call.1} parent=1 // pred_check_branch
      %12 = sbr.rel (0) target = $region9
    $region8: #{tpu_custom_call.1} parent=1 // pred_region
      %s14 = ssub.s32 8192, 8192
      %15 = vsyncadd [#allocation3], %s14
      %s16 = sshll.u32 [#allocation2], 4
      %s17 = int_to_ptr.vmem [resolvable:$true] %s16
      %22 = dma.hbm_to_vmem [thread:$0]  %s1, 8192, %s17, [#allocation3], 128, 128, 8
    $region9: #{tpu_custom_call.1} parent=1 // pred_fallthru
      _
    // Predicated region
    $region10: #{tpu_custom_call.1} parent=1 // pred_check
      _
    $region11: #{tpu_custom_call.1} parent=1 // pred_check_branch
      %24 = sbr.rel (0) target = $region13
    $region12: #{tpu_custom_call.1} parent=1 // pred_region
      _
    $region13: #{tpu_custom_call.1} parent=1 // pred_fallthru
      _
    // Predicated region
    $region14: #{tpu_custom_call.1} parent=1 // pred_check
      _
    $region15: #{tpu_custom_call.1} parent=1 // pred_check_branch
      %26 = sbr.rel (0) target = $region17
    $region16: #{tpu_custom_call.1} parent=1 // pred_region
      %27 = dma.done [#allocation3], 8192
    $region17: #{tpu_custom_call.1} parent=1 // pred_fallthru
      _
    %v29 = vld [vmem:[%s0] sm:$0xff]
    %v30 = vld [vmem:[%s0 + $0x8] sm:$0xff]
    %v31 = vld [vmem:[%s0 + $0x10] sm:$0xff]
    %v32 = vld [vmem:[%s0 + $0x18] sm:$0xff]
    %v33 = vld [vmem:[%s0 + $0x20] sm:$0xff]
    %v34 = vld [vmem:[%s0 + $0x28] sm:$0xff]
    %v35 = vld [vmem:[%s0 + $0x30] sm:$0xff]
    %v36 = vld [vmem:[%s0 + $0x38] sm:$0xff]
    %v37 = vld [vmem:[%s0 + $0x40] sm:$0xff]
    %v38 = vld [vmem:[%s0 + $0x48] sm:$0xff]
    %v39 = vld [vmem:[%s0 + $0x50] sm:$0xff]
    %v40 = vld [vmem:[%s0 + $0x58] sm:$0xff]
    %v41 = vld [vmem:[%s0 + $0x60] sm:$0xff]
    %v42 = vld [vmem:[%s0 + $0x68] sm:$0xff]
    %v43 = vld [vmem:[%s0 + $0x70] sm:$0xff]
    %v44 = vld [vmem:[%s0 + $0x78] sm:$0xff]
    %v45 = vld [vmem:[%s0 + $0x80] sm:$0xff]
    %v46 = vld [vmem:[%s0 + $0x88] sm:$0xff]
    %v47 = vld [vmem:[%s0 + $0x90] sm:$0xff]
    %v48 = vld [vmem:[%s0 + $0x98] sm:$0xff]
    %v49 = vld [vmem:[%s0 + $0xa0] sm:$0xff]
    %v50 = vld [vmem:[%s0 + $0xa8] sm:$0xff]
    %v51 = vld [vmem:[%s0 + $0xb0] sm:$0xff]
    %v52 = vld [vmem:[%s0 + $0xb8] sm:$0xff]
    %v53 = vld [vmem:[%s0 + $0xc0] sm:$0xff]
    %v54 = vld [vmem:[#allocation2] sm:$0xff]
    %v55 = vld [vmem:[#allocation2 + $0x8] sm:$0xff]
    %v56 = vld [vmem:[%s2] ss:$8 sm:$0x3]
    %v57 = vpack.c.bf16 %v30, %v29
    %v58 = vpack.c.bf16 %v32, %v31
    %v59 = vpack.c.bf16 %v34, %v33
    %v60 = vpack.c.bf16 %v36, %v35
    %v61 = vpack.c.bf16 %v38, %v37
    %v62 = vpack.c.bf16 %v40, %v39
    %v63 = vpack.c.bf16 %v42, %v41
    %v64 = vpack.c.bf16 %v44, %v43
    %v65 = vpack.c.bf16 %v46, %v45
    %v66 = vpack.c.bf16 %v48, %v47
    %v67 = vpack.c.bf16 %v50, %v49
    %v68 = vpack.c.bf16 %v52, %v51
    %v69 = vpack.c.bf16 %v53, %v53
    %v71 = vlaneseq
    %v72 = vshrl.u32 %v71, 7
    %v73 = vsub.s32 0, %v72
    %v74 = vrot.slane %v56, %v73
    %v75 = vlaneseq
    %v76 = vshrl.u32 %v75, 7
    %v77 = vsub.s32 1, %v76
    %v78 = vrot.slane %v56, %v77
    %v83 = vunpack.c.l.b16 %v54
    %v84 = vunpack.c.h.b16 %v54
    %v85 = vunpack.c.l.b16 %v55
    %v86 = vunpack.c.h.b16 %v55
    %v87 = vpack.c.b16 %v85, %v83
    %v88 = vpack.c.b16 %v86, %v84
    %vm91 = vcmask 130048
    %v93 = vsel %vm91, %v57, 0
    %v96 = vsel %vm91, %v58, 0
    %v99 = vsel %vm91, %v59, 0
    %v102 = vsel %vm91, %v60, 0
    %v105 = vsel %vm91, %v61, 0
    %v108 = vsel %vm91, %v62, 0
    %v111 = vsel %vm91, %v63, 0
    %v114 = vsel %vm91, %v64, 0
    %v117 = vsel %vm91, %v65, 0
    %v120 = vsel %vm91, %v66, 0
    %v123 = vsel %vm91, %v67, 0
    %v126 = vsel %vm91, %v68, 0
    %v129 = vsel %vm91, %v69, 0
    %131 = vmatprep.subr.bf16.mxu0 0
    %132 = vmatpush1.bf16.msra.mxu0 0
    %133 = vmatprep.subr.bf16.mxu0 0
    %134 = vmatpush1.bf16.msra.mxu0 0
    %135 = vmatprep.subr.bf16.mxu0 0
    %136 = vmatpush1.bf16.msra.mxu0 0
    %137 = vmatprep.subr.bf16.mxu0 0
    %138 = vmatpush1.bf16.msra.mxu0 0
    %139 = vmatprep.subr.bf16.mxu0 0
    %140 = vmatpush1.bf16.msra.mxu0 0
    %141 = vmatprep.subr.bf16.mxu0 0
    %142 = vmatpush1.bf16.msra.mxu0 0
    %143 = vmatprep.subr.bf16.mxu0 0
    %144 = vmatpush1.bf16.msra.mxu0 0
    %145 = vmatprep.subr.bf16.mxu0 %v88
    %146 = vmatpush1.bf16.msra.mxu0 %v87
    %147 = vmatprep.subr.bf16.mxu0 0
    %148 = vmatpush2.bf16.msra.mxu0 0
    %149 = vmatprep.subr.bf16.mxu0 0
    %150 = vmatpush2.bf16.msra.mxu0 0
    %151 = vmatprep.subr.bf16.mxu0 0
    %152 = vmatpush2.bf16.msra.mxu0 0
    %153 = vmatprep.subr.bf16.mxu0 0
    %154 = vmatpush2.bf16.msra.mxu0 0
    %155 = vmatprep.subr.bf16.mxu0 0
    %156 = vmatpush2.bf16.msra.mxu0 0
    %157 = vmatprep.subr.bf16.mxu0 0
    %158 = vmatpush2.bf16.msra.mxu0 0
    %159 = vmatprep.subr.bf16.mxu0 0
    %160 = vmatpush2.bf16.msra.mxu0 0
    %161 = vmatprep.subr.bf16.mxu0 0
    %162 = vmatpush2.bf16.msra.mxu0 0
    %163 = vmatprep.mubr.bf16.mxu0 0
    %164 = vmatmul.mubr.bf16.gmra.mxu0 %v93
    %v165 = vpop.f32.mrf.mxu0
    %v166 = vadd.f32 %v74, %v165
    %v167 = vpop.f32.mrf.mxu0
    %v168 = vadd.f32 %v78, %v167
    %v169 = vpop.f32.mrf.mxu0
    %v170 = vadd.f32 %v74, %v169
    %v171 = vpop.f32.mrf.mxu0
    %v172 = vadd.f32 %v78, %v171
    %173 = vmatprep.mubr.bf16.mxu0 0
    %174 = vmatmul.mubr.bf16.gmra.mxu0 %v96
    %v175 = vpop.f32.mrf.mxu0
    %v176 = vadd.f32 %v74, %v175
    %v177 = vpop.f32.mrf.mxu0
    %v178 = vadd.f32 %v78, %v177
    %v179 = vpop.f32.mrf.mxu0
    %v180 = vadd.f32 %v74, %v179
    %v181 = vpop.f32.mrf.mxu0
    %v182 = vadd.f32 %v78, %v181
    %183 = vmatprep.mubr.bf16.mxu0 0
    %184 = vmatmul.mubr.bf16.gmra.mxu0 %v99
    %v185 = vpop.f32.mrf.mxu0
    %v186 = vadd.f32 %v74, %v185
    %v187 = vpop.f32.mrf.mxu0
    %v188 = vadd.f32 %v78, %v187
    %v189 = vpop.f32.mrf.mxu0
    %v190 = vadd.f32 %v74, %v189
    %v191 = vpop.f32.mrf.mxu0
    %v192 = vadd.f32 %v78, %v191
    %193 = vmatprep.mubr.bf16.mxu0 0
    %194 = vmatmul.mubr.bf16.gmra.mxu0 %v102
    %v195 = vpop.f32.mrf.mxu0
    %v196 = vadd.f32 %v74, %v195
    %v197 = vpop.f32.mrf.mxu0
    %v198 = vadd.f32 %v78, %v197
    %v199 = vpop.f32.mrf.mxu0
    %v200 = vadd.f32 %v74, %v199
    %v201 = vpop.f32.mrf.mxu0
    %v202 = vadd.f32 %v78, %v201
    %203 = vmatprep.mubr.bf16.mxu0 0
    %204 = vmatmul.mubr.bf16.gmra.mxu0 %v105
    %v205 = vpop.f32.mrf.mxu0
    %v206 = vadd.f32 %v74, %v205
    %v207 = vpop.f32.mrf.mxu0
    %v208 = vadd.f32 %v78, %v207
    %v209 = vpop.f32.mrf.mxu0
    %v210 = vadd.f32 %v74, %v209
    %v211 = vpop.f32.mrf.mxu0
    %v212 = vadd.f32 %v78, %v211
    %213 = vmatprep.mubr.bf16.mxu0 0
    %214 = vmatmul.mubr.bf16.gmra.mxu0 %v108
    %v215 = vpop.f32.mrf.mxu0
    %v216 = vadd.f32 %v74, %v215
    %v217 = vpop.f32.mrf.mxu0
    %v218 = vadd.f32 %v78, %v217
    %v219 = vpop.f32.mrf.mxu0
    %v220 = vadd.f32 %v74, %v219
    %v221 = vpop.f32.mrf.mxu0
    %v222 = vadd.f32 %v78, %v221
    %223 = vmatprep.mubr.bf16.mxu0 0
    %224 = vmatmul.mubr.bf16.gmra.mxu0 %v111
    %v225 = vpop.f32.mrf.mxu0
    %v226 = vadd.f32 %v74, %v225
    %v227 = vpop.f32.mrf.mxu0
    %v228 = vadd.f32 %v78, %v227
    %v229 = vpop.f32.mrf.mxu0
    %v230 = vadd.f32 %v74, %v229
    %v231 = vpop.f32.mrf.mxu0
    %v232 = vadd.f32 %v78, %v231
    %233 = vmatprep.mubr.bf16.mxu0 0
    %234 = vmatmul.mubr.bf16.gmra.mxu0 %v114
    %v235 = vpop.f32.mrf.mxu0
    %v236 = vadd.f32 %v74, %v235
    %v237 = vpop.f32.mrf.mxu0
    %v238 = vadd.f32 %v78, %v237
    %v239 = vpop.f32.mrf.mxu0
    %v240 = vadd.f32 %v74, %v239
    %v241 = vpop.f32.mrf.mxu0
    %v242 = vadd.f32 %v78, %v241
    %243 = vmatprep.mubr.bf16.mxu0 0
    %244 = vmatmul.mubr.bf16.gmra.mxu0 %v117
    %v245 = vpop.f32.mrf.mxu0
    %v246 = vadd.f32 %v74, %v245
    %v247 = vpop.f32.mrf.mxu0
    %v248 = vadd.f32 %v78, %v247
    %v249 = vpop.f32.mrf.mxu0
    %v250 = vadd.f32 %v74, %v249
    %v251 = vpop.f32.mrf.mxu0
    %v252 = vadd.f32 %v78, %v251
    %253 = vmatprep.mubr.bf16.mxu0 0
    %254 = vmatmul.mubr.bf16.gmra.mxu0 %v120
    %v255 = vpop.f32.mrf.mxu0
    %v256 = vadd.f32 %v74, %v255
    %v257 = vpop.f32.mrf.mxu0
    %v258 = vadd.f32 %v78, %v257
    %v259 = vpop.f32.mrf.mxu0
    %v260 = vadd.f32 %v74, %v259
    %v261 = vpop.f32.mrf.mxu0
    %v262 = vadd.f32 %v78, %v261
    %263 = vmatprep.mubr.bf16.mxu0 0
    %264 = vmatmul.mubr.bf16.gmra.mxu0 %v123
    %v265 = vpop.f32.mrf.mxu0
    %v266 = vadd.f32 %v74, %v265
    %v267 = vpop.f32.mrf.mxu0
    %v268 = vadd.f32 %v78, %v267
    %v269 = vpop.f32.mrf.mxu0
    %v270 = vadd.f32 %v74, %v269
    %v271 = vpop.f32.mrf.mxu0
    %v272 = vadd.f32 %v78, %v271
    %273 = vmatprep.mubr.bf16.mxu0 0
    %274 = vmatmul.mubr.bf16.gmra.mxu0 %v126
    %v275 = vpop.f32.mrf.mxu0
    %v276 = vadd.f32 %v74, %v275
    %v277 = vpop.f32.mrf.mxu0
    %v278 = vadd.f32 %v78, %v277
    %v279 = vpop.f32.mrf.mxu0
    %v280 = vadd.f32 %v74, %v279
    %v281 = vpop.f32.mrf.mxu0
    %v282 = vadd.f32 %v78, %v281
    %283 = vmatprep.mubr.bf16.mxu0 0
    %284 = vmatmul.mubr.bf16.gmra.mxu0 %v129
    %v285 = vpop.f32.mrf.mxu0
    %v286 = vadd.f32 %v74, %v285
    %v287 = vpop.f32.mrf.mxu0
    %v288 = vadd.f32 %v78, %v287
    %v289 = vpop.f32.mrf.mxu0
    %v290 = vpop.f32.mrf.mxu0
    %291 = vdwg.mxu0
    %vm292 = vcmp.gt.f32.partialorder %v166, 0.0
    %vm293 = vcmp.gt.f32.partialorder %v168, 0.0
    %vm294 = vcmp.gt.f32.partialorder %v170, 0.0
    %vm295 = vcmp.gt.f32.partialorder %v172, 0.0
    %vm296 = vcmp.gt.f32.partialorder %v176, 0.0
    %vm297 = vcmp.gt.f32.partialorder %v178, 0.0
    %vm298 = vcmp.gt.f32.partialorder %v180, 0.0
    %vm299 = vcmp.gt.f32.partialorder %v182, 0.0
    %vm300 = vcmp.gt.f32.partialorder %v186, 0.0
    %vm301 = vcmp.gt.f32.partialorder %v188, 0.0
    %vm302 = vcmp.gt.f32.partialorder %v190, 0.0
    %vm303 = vcmp.gt.f32.partialorder %v192, 0.0
    %vm304 = vcmp.gt.f32.partialorder %v196, 0.0
    %vm305 = vcmp.gt.f32.partialorder %v198, 0.0
    %vm306 = vcmp.gt.f32.partialorder %v200, 0.0
    %vm307 = vcmp.gt.f32.partialorder %v202, 0.0
    %vm308 = vcmp.gt.f32.partialorder %v206, 0.0
    %vm309 = vcmp.gt.f32.partialorder %v208, 0.0
    %vm310 = vcmp.gt.f32.partialorder %v210, 0.0
    %vm311 = vcmp.gt.f32.partialorder %v212, 0.0
    %vm312 = vcmp.gt.f32.partialorder %v216, 0.0
    %vm313 = vcmp.gt.f32.partialorder %v218, 0.0
    %vm314 = vcmp.gt.f32.partialorder %v220, 0.0
    %vm315 = vcmp.gt.f32.partialorder %v222, 0.0
    %vm316 = vcmp.gt.f32.partialorder %v226, 0.0
    %vm317 = vcmp.gt.f32.partialorder %v228, 0.0
    %vm318 = vcmp.gt.f32.partialorder %v230, 0.0
    %vm319 = vcmp.gt.f32.partialorder %v232, 0.0
    %vm320 = vcmp.gt.f32.partialorder %v236, 0.0
    %vm321 = vcmp.gt.f32.partialorder %v238, 0.0
    %vm322 = vcmp.gt.f32.partialorder %v240, 0.0
    %vm323 = vcmp.gt.f32.partialorder %v242, 0.0
    %vm324 = vcmp.gt.f32.partialorder %v246, 0.0
    %vm325 = vcmp.gt.f32.partialorder %v248, 0.0
    %vm326 = vcmp.gt.f32.partialorder %v250, 0.0
    %vm327 = vcmp.gt.f32.partialorder %v252, 0.0
    %vm328 = vcmp.gt.f32.partialorder %v256, 0.0
    %vm329 = vcmp.gt.f32.partialorder %v258, 0.0
    %vm330 = vcmp.gt.f32.partialorder %v260, 0.0
    %vm331 = vcmp.gt.f32.partialorder %v262, 0.0
    %vm332 = vcmp.gt.f32.partialorder %v266, 0.0
    %vm333 = vcmp.gt.f32.partialorder %v268, 0.0
    %vm334 = vcmp.gt.f32.partialorder %v270, 0.0
    %vm335 = vcmp.gt.f32.partialorder %v272, 0.0
    %vm336 = vcmp.gt.f32.partialorder %v276, 0.0
    %vm337 = vcmp.gt.f32.partialorder %v278, 0.0
    %vm338 = vcmp.gt.f32.partialorder %v280, 0.0
    %vm339 = vcmp.gt.f32.partialorder %v282, 0.0
    %vm340 = vcmp.gt.f32.partialorder %v286, 0.0
    %vm341 = vcmp.gt.f32.partialorder %v288, 0.0
    %v342 = vmul.f32 %v166, 0.01
    %v343 = vmul.f32 %v168, 0.01
    %v344 = vmul.f32 %v170, 0.01
    %v345 = vmul.f32 %v172, 0.01
    %v346 = vmul.f32 %v176, 0.01
    %v347 = vmul.f32 %v178, 0.01
    %v348 = vmul.f32 %v180, 0.01
    %v349 = vmul.f32 %v182, 0.01
    %v350 = vmul.f32 %v186, 0.01
    %v351 = vmul.f32 %v188, 0.01
    %v352 = vmul.f32 %v190, 0.01
    %v353 = vmul.f32 %v192, 0.01
    %v354 = vmul.f32 %v196, 0.01
    %v355 = vmul.f32 %v198, 0.01
    %v356 = vmul.f32 %v200, 0.01
    %v357 = vmul.f32 %v202, 0.01
    %v358 = vmul.f32 %v206, 0.01
    %v359 = vmul.f32 %v208, 0.01
    %v360 = vmul.f32 %v210, 0.01
    %v361 = vmul.f32 %v212, 0.01
    %v362 = vmul.f32 %v216, 0.01
    %v363 = vmul.f32 %v218, 0.01
    %v364 = vmul.f32 %v220, 0.01
    %v365 = vmul.f32 %v222, 0.01
    %v366 = vmul.f32 %v226, 0.01
    %v367 = vmul.f32 %v228, 0.01
    %v368 = vmul.f32 %v230, 0.01
    %v369 = vmul.f32 %v232, 0.01
    %v370 = vmul.f32 %v236, 0.01
    %v371 = vmul.f32 %v238, 0.01
    %v372 = vmul.f32 %v240, 0.01
    %v373 = vmul.f32 %v242, 0.01
    %v374 = vmul.f32 %v246, 0.01
    %v375 = vmul.f32 %v248, 0.01
    %v376 = vmul.f32 %v250, 0.01
    %v377 = vmul.f32 %v252, 0.01
    %v378 = vmul.f32 %v256, 0.01
    %v379 = vmul.f32 %v258, 0.01
    %v380 = vmul.f32 %v260, 0.01
    %v381 = vmul.f32 %v262, 0.01
    %v382 = vmul.f32 %v266, 0.01
    %v383 = vmul.f32 %v268, 0.01
    %v384 = vmul.f32 %v270, 0.01
    %v385 = vmul.f32 %v272, 0.01
    %v386 = vmul.f32 %v276, 0.01
    %v387 = vmul.f32 %v278, 0.01
    %v388 = vmul.f32 %v280, 0.01
    %v389 = vmul.f32 %v282, 0.01
    %v390 = vmul.f32 %v286, 0.01
    %v391 = vmul.f32 %v288, 0.01
    %v392 = vsel %vm292, %v166, %v342
    %v393 = vsel %vm293, %v168, %v343
    %v394 = vsel %vm294, %v170, %v344
    %v395 = vsel %vm295, %v172, %v345
    %v396 = vsel %vm296, %v176, %v346
    %v397 = vsel %vm297, %v178, %v347
    %v398 = vsel %vm298, %v180, %v348
    %v399 = vsel %vm299, %v182, %v349
    %v400 = vsel %vm300, %v186, %v350
    %v401 = vsel %vm301, %v188, %v351
    %v402 = vsel %vm302, %v190, %v352
    %v403 = vsel %vm303, %v192, %v353
    %v404 = vsel %vm304, %v196, %v354
    %v405 = vsel %vm305, %v198, %v355
    %v406 = vsel %vm306, %v200, %v356
    %v407 = vsel %vm307, %v202, %v357
    %v408 = vsel %vm308, %v206, %v358
    %v409 = vsel %vm309, %v208, %v359
    %v410 = vsel %vm310, %v210, %v360
    %v411 = vsel %vm311, %v212, %v361
    %v412 = vsel %vm312, %v216, %v362
    %v413 = vsel %vm313, %v218, %v363
    %v414 = vsel %vm314, %v220, %v364
    %v415 = vsel %vm315, %v222, %v365
    %v416 = vsel %vm316, %v226, %v366
    %v417 = vsel %vm317, %v228, %v367
    %v418 = vsel %vm318, %v230, %v368
    %v419 = vsel %vm319, %v232, %v369
    %v420 = vsel %vm320, %v236, %v370
    %v421 = vsel %vm321, %v238, %v371
    %v422 = vsel %vm322, %v240, %v372
    %v423 = vsel %vm323, %v242, %v373
    %v424 = vsel %vm324, %v246, %v374
    %v425 = vsel %vm325, %v248, %v375
    %v426 = vsel %vm326, %v250, %v376
    %v427 = vsel %vm327, %v252, %v377
    %v428 = vsel %vm328, %v256, %v378
    %v429 = vsel %vm329, %v258, %v379
    %v430 = vsel %vm330, %v260, %v380
    %v431 = vsel %vm331, %v262, %v381
    %v432 = vsel %vm332, %v266, %v382
    %v433 = vsel %vm333, %v268, %v383
    %v434 = vsel %vm334, %v270, %v384
    %v435 = vsel %vm335, %v272, %v385
    %v436 = vsel %vm336, %v276, %v386
    %v437 = vsel %vm337, %v278, %v387
    %v438 = vsel %vm338, %v280, %v388
    %v439 = vsel %vm339, %v282, %v389
    %v440 = vsel %vm340, %v286, %v390
    %v441 = vsel %vm341, %v288, %v391
    %v442 = vld [vmem:[#allocation2 + $0x10] sm:$0xf]
    %v443 = vld [vmem:[#allocation2 + $0x18] sm:$0xf]
    %v444 = vld [vmem:[#allocation2 + $0x20] sm:$0xf]
    %v445 = vld [vmem:[#allocation2 + $0x28] sm:$0xf]
    %v446 = vld [vmem:[#allocation2 + $0x30] sm:$0xf]
    %v447 = vld [vmem:[#allocation2 + $0x38] sm:$0xf]
    %v448 = vld [vmem:[#allocation2 + $0x40] sm:$0xf]
    %v449 = vld [vmem:[#allocation2 + $0x48] sm:$0xf]
    %v450 = vld [vmem:[#allocation2 + $0x50] sm:$0xf]
    %v451 = vld [vmem:[#allocation2 + $0x58] sm:$0xf]
    %v452 = vld [vmem:[#allocation2 + $0x60] sm:$0xf]
    %v453 = vld [vmem:[#allocation2 + $0x68] sm:$0xf]
    %v454 = vld [vmem:[#allocation2 + $0x70] sm:$0xf]
    %v455 = vld [vmem:[#allocation2 + $0x78] sm:$0xf]
    %v456 = vld [vmem:[#allocation2 + $0x80] sm:$0xf]
    %v457 = vld [vmem:[#allocation2 + $0x88] sm:$0xf]
    %v458 = vld [vmem:[#allocation2 + $0x90] sm:$0xf]
    %v459 = vld [vmem:[#allocation2 + $0x98] sm:$0xf]
    %v460 = vld [vmem:[#allocation2 + $0xa0] sm:$0xf]
    %v461 = vld [vmem:[#allocation2 + $0xa8] sm:$0xf]
    %v462 = vld [vmem:[#allocation2 + $0xb0] sm:$0xf]
    %v463 = vld [vmem:[#allocation2 + $0xb8] sm:$0xf]
    %v464 = vld [vmem:[#allocation2 + $0xc0] sm:$0xf]
    %v465 = vld [vmem:[#allocation2 + $0xc8] sm:$0xf]
    %v466 = vld [vmem:[#allocation2 + $0xd0] sm:$0xf]
    %v467 = vld [vmem:[#allocation2 + $0xd8] sm:$0xf]
    %v468 = vld [vmem:[#allocation2 + $0xe0] sm:$0xf]
    %v469 = vld [vmem:[#allocation2 + $0xe8] sm:$0xf]
    %v470 = vld [vmem:[#allocation2 + $0xf0] sm:$0xf]
    %v471 = vld [vmem:[#allocation2 + $0xf8] sm:$0xf]
    %v472 = vld [vmem:[#allocation2 + $0x100] sm:$0xf]
    %v473 = vld [vmem:[#allocation2 + $0x108] sm:$0xf]
    %v474 = vld [vmem:[%s2 + $0x1] ss:$0 sm:$0xff]
    %v475 = vpack.c.bf16 %v394, %v392
    %v476 = vpack.c.bf16 %v395, %v393
    %v477 = vpack.c.bf16 %v398, %v396
    %v478 = vpack.c.bf16 %v399, %v397
    %v479 = vpack.c.bf16 %v402, %v400
    %v480 = vpack.c.bf16 %v403, %v401
    %v481 = vpack.c.bf16 %v406, %v404
    %v482 = vpack.c.bf16 %v407, %v405
    %v483 = vpack.c.bf16 %v410, %v408
    %v484 = vpack.c.bf16 %v411, %v409
    %v485 = vpack.c.bf16 %v414, %v412
    %v486 = vpack.c.bf16 %v415, %v413
    %v487 = vpack.c.bf16 %v418, %v416
    %v488 = vpack.c.bf16 %v419, %v417
    %v489 = vpack.c.bf16 %v422, %v420
    %v490 = vpack.c.bf16 %v423, %v421
    %v491 = vpack.c.bf16 %v426, %v424
    %v492 = vpack.c.bf16 %v427, %v425
    %v493 = vpack.c.bf16 %v430, %v428
    %v494 = vpack.c.bf16 %v431, %v429
    %v495 = vpack.c.bf16 %v434, %v432
    %v496 = vpack.c.bf16 %v435, %v433
    %v497 = vpack.c.bf16 %v438, %v436
    %v498 = vpack.c.bf16 %v439, %v437
    %v499 = vpack.c.bf16 %v440, %v440
    %v500 = vpack.c.bf16 %v441, %v441
    %v533 = vunpack.c.l.b16 %v442
    %v534 = vunpack.c.l.b16 %v443
    %v535 = vunpack.c.l.b16 %v444
    %v536 = vunpack.c.l.b16 %v445
    %v537 = vunpack.c.l.b16 %v446
    %v538 = vunpack.c.l.b16 %v447
    %v539 = vunpack.c.l.b16 %v448
    %v540 = vunpack.c.l.b16 %v449
    %v541 = vunpack.c.l.b16 %v450
    %v542 = vunpack.c.l.b16 %v451
    %v543 = vunpack.c.l.b16 %v452
    %v544 = vunpack.c.l.b16 %v453
    %v545 = vunpack.c.l.b16 %v454
    %v546 = vunpack.c.l.b16 %v455
    %v547 = vunpack.c.l.b16 %v456
    %v548 = vunpack.c.l.b16 %v457
    %v549 = vunpack.c.l.b16 %v458
    %v550 = vunpack.c.l.b16 %v459
    %v551 = vunpack.c.l.b16 %v460
    %v552 = vunpack.c.l.b16 %v461
    %v553 = vunpack.c.l.b16 %v462
    %v554 = vunpack.c.l.b16 %v463
    %v555 = vunpack.c.l.b16 %v464
    %v556 = vunpack.c.l.b16 %v465
    %v557 = vunpack.c.l.b16 %v466
    %v558 = vunpack.c.l.b16 %v467
    %v559 = vunpack.c.l.b16 %v468
    %v560 = vunpack.c.l.b16 %v469
    %v561 = vunpack.c.l.b16 %v470
    %v562 = vunpack.c.l.b16 %v471
    %v563 = vunpack.c.l.b16 %v472
    %v564 = vunpack.c.l.b16 %v473
    %v565 = vpack.c.b16 %v534, %v533
    %v566 = vpack.c.b16 %v536, %v535
    %v567 = vpack.c.b16 %v538, %v537
    %v568 = vpack.c.b16 %v540, %v539
    %v569 = vpack.c.b16 %v542, %v541
    %v570 = vpack.c.b16 %v544, %v543
    %v571 = vpack.c.b16 %v546, %v545
    %v572 = vpack.c.b16 %v548, %v547
    %v573 = vpack.c.b16 %v550, %v549
    %v574 = vpack.c.b16 %v552, %v551
    %v575 = vpack.c.b16 %v554, %v553
    %v576 = vpack.c.b16 %v556, %v555
    %v577 = vpack.c.b16 %v558, %v557
    %v578 = vpack.c.b16 %v560, %v559
    %v579 = vpack.c.b16 %v562, %v561
    %v580 = vpack.c.b16 %v564, %v563
    %597 = vmatprep.subr.bf16.mxu0 0
    %598 = vmatpush1.bf16.msra.mxu0 %v572
    %599 = vmatprep.subr.bf16.mxu0 0
    %600 = vmatpush1.bf16.msra.mxu0 %v571
    %601 = vmatprep.subr.bf16.mxu0 0
    %602 = vmatpush1.bf16.msra.mxu0 %v570
    %603 = vmatprep.subr.bf16.mxu0 0
    %604 = vmatpush1.bf16.msra.mxu0 %v569
    %605 = vmatprep.subr.bf16.mxu0 0
    %606 = vmatpush1.bf16.msra.mxu0 %v568
    %607 = vmatprep.subr.bf16.mxu0 0
    %608 = vmatpush1.bf16.msra.mxu0 %v567
    %609 = vmatprep.subr.bf16.mxu0 0
    %610 = vmatpush1.bf16.msra.mxu0 %v566
    %611 = vmatprep.subr.bf16.mxu0 0
    %612 = vmatpush1.bf16.msra.mxu0 %v565
    %613 = vmatprep.subr.bf16.mxu0 0
    %614 = vmatpush2.bf16.msra.mxu0 %v580
    %615 = vmatprep.subr.bf16.mxu0 0
    %616 = vmatpush2.bf16.msra.mxu0 %v579
    %617 = vmatprep.subr.bf16.mxu0 0
    %618 = vmatpush2.bf16.msra.mxu0 %v578
    %619 = vmatprep.subr.bf16.mxu0 0
    %620 = vmatpush2.bf16.msra.mxu0 %v577
    %621 = vmatprep.subr.bf16.mxu0 0
    %622 = vmatpush2.bf16.msra.mxu0 %v576
    %623 = vmatprep.subr.bf16.mxu0 0
    %624 = vmatpush2.bf16.msra.mxu0 %v575
    %625 = vmatprep.subr.bf16.mxu0 0
    %626 = vmatpush2.bf16.msra.mxu0 %v574
    %627 = vmatprep.subr.bf16.mxu0 0
    %628 = vmatpush2.bf16.msra.mxu0 %v573
    %629 = vmatprep.mubr.bf16.mxu0 %v476
    %630 = vmatmul.mubr.bf16.gmra.mxu0 %v475
    %v631 = vpop.f32.mrf.mxu0
    %v632 = vadd.f32 %v474, %v631
    %v633 = vpop.f32.mrf.mxu0
    %v634 = vpop.f32.mrf.mxu0
    %v635 = vadd.f32 %v474, %v634
    %v636 = vpop.f32.mrf.mxu0
    %637 = vmatprep.mubr.bf16.mxu0 %v478
    %638 = vmatmul.mubr.bf16.gmra.mxu0 %v477
    %v639 = vpop.f32.mrf.mxu0
    %v640 = vadd.f32 %v474, %v639
    %v641 = vpop.f32.mrf.mxu0
    %v642 = vpop.f32.mrf.mxu0
    %v643 = vadd.f32 %v474, %v642
    %v644 = vpop.f32.mrf.mxu0
    %645 = vmatprep.mubr.bf16.mxu0 %v480
    %646 = vmatmul.mubr.bf16.gmra.mxu0 %v479
    %v647 = vpop.f32.mrf.mxu0
    %v648 = vadd.f32 %v474, %v647
    %v649 = vpop.f32.mrf.mxu0
    %v650 = vpop.f32.mrf.mxu0
    %v651 = vadd.f32 %v474, %v650
    %v652 = vpop.f32.mrf.mxu0
    %653 = vmatprep.mubr.bf16.mxu0 %v482
    %654 = vmatmul.mubr.bf16.gmra.mxu0 %v481
    %v655 = vpop.f32.mrf.mxu0
    %v656 = vadd.f32 %v474, %v655
    %v657 = vpop.f32.mrf.mxu0
    %v658 = vpop.f32.mrf.mxu0
    %v659 = vadd.f32 %v474, %v658
    %v660 = vpop.f32.mrf.mxu0
    %661 = vmatprep.mubr.bf16.mxu0 %v484
    %662 = vmatmul.mubr.bf16.gmra.mxu0 %v483
    %v663 = vpop.f32.mrf.mxu0
    %v664 = vadd.f32 %v474, %v663
    %v665 = vpop.f32.mrf.mxu0
    %v666 = vpop.f32.mrf.mxu0
    %v667 = vadd.f32 %v474, %v666
    %v668 = vpop.f32.mrf.mxu0
    %669 = vmatprep.mubr.bf16.mxu0 %v486
    %670 = vmatmul.mubr.bf16.gmra.mxu0 %v485
    %v671 = vpop.f32.mrf.mxu0
    %v672 = vadd.f32 %v474, %v671
    %v673 = vpop.f32.mrf.mxu0
    %v674 = vpop.f32.mrf.mxu0
    %v675 = vadd.f32 %v474, %v674
    %v676 = vpop.f32.mrf.mxu0
    %677 = vmatprep.mubr.bf16.mxu0 %v488
    %678 = vmatmul.mubr.bf16.gmra.mxu0 %v487
    %v679 = vpop.f32.mrf.mxu0
    %v680 = vadd.f32 %v474, %v679
    %v681 = vpop.f32.mrf.mxu0
    %v682 = vpop.f32.mrf.mxu0
    %v683 = vadd.f32 %v474, %v682
    %v684 = vpop.f32.mrf.mxu0
    %685 = vmatprep.mubr.bf16.mxu0 %v490
    %686 = vmatmul.mubr.bf16.gmra.mxu0 %v489
    %v687 = vpop.f32.mrf.mxu0
    %v688 = vadd.f32 %v474, %v687
    %v689 = vpop.f32.mrf.mxu0
    %v690 = vpop.f32.mrf.mxu0
    %v691 = vadd.f32 %v474, %v690
    %v692 = vpop.f32.mrf.mxu0
    %693 = vmatprep.mubr.bf16.mxu0 %v492
    %694 = vmatmul.mubr.bf16.gmra.mxu0 %v491
    %v695 = vpop.f32.mrf.mxu0
    %v696 = vadd.f32 %v474, %v695
    %v697 = vpop.f32.mrf.mxu0
    %v698 = vpop.f32.mrf.mxu0
    %v699 = vadd.f32 %v474, %v698
    %v700 = vpop.f32.mrf.mxu0
    %701 = vmatprep.mubr.bf16.mxu0 %v494
    %702 = vmatmul.mubr.bf16.gmra.mxu0 %v493
    %v703 = vpop.f32.mrf.mxu0
    %v704 = vadd.f32 %v474, %v703
    %v705 = vpop.f32.mrf.mxu0
    %v706 = vpop.f32.mrf.mxu0
    %v707 = vadd.f32 %v474, %v706
    %v708 = vpop.f32.mrf.mxu0
    %709 = vmatprep.mubr.bf16.mxu0 %v496
    %710 = vmatmul.mubr.bf16.gmra.mxu0 %v495
    %v711 = vpop.f32.mrf.mxu0
    %v712 = vadd.f32 %v474, %v711
    %v713 = vpop.f32.mrf.mxu0
    %v714 = vpop.f32.mrf.mxu0
    %v715 = vadd.f32 %v474, %v714
    %v716 = vpop.f32.mrf.mxu0
    %717 = vmatprep.mubr.bf16.mxu0 %v498
    %718 = vmatmul.mubr.bf16.gmra.mxu0 %v497
    %v719 = vpop.f32.mrf.mxu0
    %v720 = vadd.f32 %v474, %v719
    %v721 = vpop.f32.mrf.mxu0
    %v722 = vpop.f32.mrf.mxu0
    %v723 = vadd.f32 %v474, %v722
    %v724 = vpop.f32.mrf.mxu0
    %725 = vmatprep.mubr.bf16.mxu0 %v500
    %726 = vmatmul.mubr.bf16.gmra.mxu0 %v499
    %v727 = vpop.f32.mrf.mxu0
    %v728 = vadd.f32 %v474, %v727
    %v729 = vpop.f32.mrf.mxu0
    %v730 = vpop.f32.mrf.mxu0
    %v731 = vpop.f32.mrf.mxu0
    %732 = vdwg.mxu0
    %vm733 = vcmp.gt.f32.partialorder %v632, 0.0
    %vm734 = vcmp.gt.f32.partialorder %v635, 0.0
    %vm735 = vcmp.gt.f32.partialorder %v640, 0.0
    %vm736 = vcmp.gt.f32.partialorder %v643, 0.0
    %vm737 = vcmp.gt.f32.partialorder %v648, 0.0
    %vm738 = vcmp.gt.f32.partialorder %v651, 0.0
    %vm739 = vcmp.gt.f32.partialorder %v656, 0.0
    %vm740 = vcmp.gt.f32.partialorder %v659, 0.0
    %vm741 = vcmp.gt.f32.partialorder %v664, 0.0
    %vm742 = vcmp.gt.f32.partialorder %v667, 0.0
    %vm743 = vcmp.gt.f32.partialorder %v672, 0.0
    %vm744 = vcmp.gt.f32.partialorder %v675, 0.0
    %vm745 = vcmp.gt.f32.partialorder %v680, 0.0
    %vm746 = vcmp.gt.f32.partialorder %v683, 0.0
    %vm747 = vcmp.gt.f32.partialorder %v688, 0.0
    %vm748 = vcmp.gt.f32.partialorder %v691, 0.0
    %vm749 = vcmp.gt.f32.partialorder %v696, 0.0
    %vm750 = vcmp.gt.f32.partialorder %v699, 0.0
    %vm751 = vcmp.gt.f32.partialorder %v704, 0.0
    %vm752 = vcmp.gt.f32.partialorder %v707, 0.0
    %vm753 = vcmp.gt.f32.partialorder %v712, 0.0
    %vm754 = vcmp.gt.f32.partialorder %v715, 0.0
    %vm755 = vcmp.gt.f32.partialorder %v720, 0.0
    %vm756 = vcmp.gt.f32.partialorder %v723, 0.0
    %vm757 = vcmp.gt.f32.partialorder %v728, 0.0
    %v758 = vmul.f32 %v632, 0.01
    %v759 = vmul.f32 %v635, 0.01
    %v760 = vmul.f32 %v640, 0.01
    %v761 = vmul.f32 %v643, 0.01
    %v762 = vmul.f32 %v648, 0.01
    %v763 = vmul.f32 %v651, 0.01
    %v764 = vmul.f32 %v656, 0.01
    %v765 = vmul.f32 %v659, 0.01
    %v766 = vmul.f32 %v664, 0.01
    %v767 = vmul.f32 %v667, 0.01
    %v768 = vmul.f32 %v672, 0.01
    %v769 = vmul.f32 %v675, 0.01
    %v770 = vmul.f32 %v680, 0.01
    %v771 = vmul.f32 %v683, 0.01
    %v772 = vmul.f32 %v688, 0.01
    %v773 = vmul.f32 %v691, 0.01
    %v774 = vmul.f32 %v696, 0.01
    %v775 = vmul.f32 %v699, 0.01
    %v776 = vmul.f32 %v704, 0.01
    %v777 = vmul.f32 %v707, 0.01
    %v778 = vmul.f32 %v712, 0.01
    %v779 = vmul.f32 %v715, 0.01
    %v780 = vmul.f32 %v720, 0.01
    %v781 = vmul.f32 %v723, 0.01
    %v782 = vmul.f32 %v728, 0.01
    %v783 = vsel %vm733, %v632, %v758
    %v784 = vsel %vm734, %v635, %v759
    %v785 = vsel %vm735, %v640, %v760
    %v786 = vsel %vm736, %v643, %v761
    %v787 = vsel %vm737, %v648, %v762
    %v788 = vsel %vm738, %v651, %v763
    %v789 = vsel %vm739, %v656, %v764
    %v790 = vsel %vm740, %v659, %v765
    %v791 = vsel %vm741, %v664, %v766
    %v792 = vsel %vm742, %v667, %v767
    %v793 = vsel %vm743, %v672, %v768
    %v794 = vsel %vm744, %v675, %v769
    %v795 = vsel %vm745, %v680, %v770
    %v796 = vsel %vm746, %v683, %v771
    %v797 = vsel %vm747, %v688, %v772
    %v798 = vsel %vm748, %v691, %v773
    %v799 = vsel %vm749, %v696, %v774
    %v800 = vsel %vm750, %v699, %v775
    %v801 = vsel %vm751, %v704, %v776
    %v802 = vsel %vm752, %v707, %v777
    %v803 = vsel %vm753, %v712, %v778
    %v804 = vsel %vm754, %v715, %v779
    %v805 = vsel %vm755, %v720, %v780
    %v806 = vsel %vm756, %v723, %v781
    %v807 = vsel %vm757, %v728, %v782
    %v808 = vld [vmem:[#allocation2 + $0x110] sm:$0xf]
    %v809 = vld [vmem:[#allocation2 + $0x118] sm:$0xf]
    %v810 = vld [vmem:[#allocation2 + $0x120] sm:$0xf]
    %v811 = vld [vmem:[#allocation2 + $0x128] sm:$0xf]
    %v812 = vld [vmem:[#allocation2 + $0x130] sm:$0xf]
    %v813 = vld [vmem:[#allocation2 + $0x138] sm:$0xf]
    %v814 = vld [vmem:[#allocation2 + $0x140] sm:$0xf]
    %v815 = vld [vmem:[#allocation2 + $0x148] sm:$0xf]
    %v816 = vld [vmem:[#allocation2 + $0x150] sm:$0xf]
    %v817 = vld [vmem:[#allocation2 + $0x158] sm:$0xf]
    %v818 = vld [vmem:[#allocation2 + $0x160] sm:$0xf]
    %v819 = vld [vmem:[#allocation2 + $0x168] sm:$0xf]
    %v820 = vld [vmem:[#allocation2 + $0x170] sm:$0xf]
    %v821 = vld [vmem:[#allocation2 + $0x178] sm:$0xf]
    %v822 = vld [vmem:[#allocation2 + $0x180] sm:$0xf]
    %v823 = vld [vmem:[#allocation2 + $0x188] sm:$0xf]
    %v824 = vld [vmem:[%s2 + $0x2] ss:$0 sm:$0xff]
    %v825 = vpack.c.bf16 %v784, %v783
    %v826 = vpack.c.bf16 %v786, %v785
    %v827 = vpack.c.bf16 %v788, %v787
    %v828 = vpack.c.bf16 %v790, %v789
    %v829 = vpack.c.bf16 %v792, %v791
    %v830 = vpack.c.bf16 %v794, %v793
    %v831 = vpack.c.bf16 %v796, %v795
    %v832 = vpack.c.bf16 %v798, %v797
    %v833 = vpack.c.bf16 %v800, %v799
    %v834 = vpack.c.bf16 %v802, %v801
    %v835 = vpack.c.bf16 %v804, %v803
    %v836 = vpack.c.bf16 %v806, %v805
    %v837 = vpack.c.bf16 %v807, %v807
    %v854 = vunpack.c.l.b16 %v808
    %v855 = vunpack.c.l.b16 %v809
    %v856 = vunpack.c.l.b16 %v810
    %v857 = vunpack.c.l.b16 %v811
    %v858 = vunpack.c.l.b16 %v812
    %v859 = vunpack.c.l.b16 %v813
    %v860 = vunpack.c.l.b16 %v814
    %v861 = vunpack.c.l.b16 %v815
    %v862 = vunpack.c.l.b16 %v816
    %v863 = vunpack.c.l.b16 %v817
    %v864 = vunpack.c.l.b16 %v818
    %v865 = vunpack.c.l.b16 %v819
    %v866 = vunpack.c.l.b16 %v820
    %v867 = vunpack.c.l.b16 %v821
    %v868 = vunpack.c.l.b16 %v822
    %v869 = vunpack.c.l.b16 %v823
    %v870 = vpack.c.b16 %v855, %v854
    %v871 = vpack.c.b16 %v857, %v856
    %v872 = vpack.c.b16 %v859, %v858
    %v873 = vpack.c.b16 %v861, %v860
    %v874 = vpack.c.b16 %v863, %v862
    %v875 = vpack.c.b16 %v865, %v864
    %v876 = vpack.c.b16 %v867, %v866
    %v877 = vpack.c.b16 %v869, %v868
    %886 = vmatprep.subr.bf16.mxu0 0
    %887 = vmatpush1.bf16.msra.mxu0 %v877
    %888 = vmatprep.subr.bf16.mxu0 0
    %889 = vmatpush1.bf16.msra.mxu0 %v876
    %890 = vmatprep.subr.bf16.mxu0 0
    %891 = vmatpush1.bf16.msra.mxu0 %v875
    %892 = vmatprep.subr.bf16.mxu0 0
    %893 = vmatpush1.bf16.msra.mxu0 %v874
    %894 = vmatprep.subr.bf16.mxu0 0
    %895 = vmatpush1.bf16.msra.mxu0 %v873
    %896 = vmatprep.subr.bf16.mxu0 0
    %897 = vmatpush1.bf16.msra.mxu0 %v872
    %898 = vmatprep.subr.bf16.mxu0 0
    %899 = vmatpush1.bf16.msra.mxu0 %v871
    %900 = vmatprep.subr.bf16.mxu0 0
    %901 = vmatpush1.bf16.msra.mxu0 %v870
    %902 = vmatprep.subr.bf16.mxu0 0
    %903 = vmatpush2.bf16.msra.mxu0 0
    %904 = vmatprep.subr.bf16.mxu0 0
    %905 = vmatpush2.bf16.msra.mxu0 0
    %906 = vmatprep.subr.bf16.mxu0 0
    %907 = vmatpush2.bf16.msra.mxu0 0
    %908 = vmatprep.subr.bf16.mxu0 0
    %909 = vmatpush2.bf16.msra.mxu0 0
    %910 = vmatprep.subr.bf16.mxu0 0
    %911 = vmatpush2.bf16.msra.mxu0 0
    %912 = vmatprep.subr.bf16.mxu0 0
    %913 = vmatpush2.bf16.msra.mxu0 0
    %914 = vmatprep.subr.bf16.mxu0 0
    %915 = vmatpush2.bf16.msra.mxu0 0
    %916 = vmatprep.subr.bf16.mxu0 0
    %917 = vmatpush2.bf16.msra.mxu0 0
    %918 = vmatprep.mubr.bf16.mxu0 0
    %919 = vmatmul.mubr.bf16.gmra.mxu0 %v825
    %v920 = vpop.f32.mrf.mxu0
    %v921 = vadd.f32 %v824, %v920
    %v922 = vpop.f32.mrf.mxu0
    %v923 = vpop.f32.mrf.mxu0
    %v924 = vadd.f32 %v824, %v923
    %v925 = vpop.f32.mrf.mxu0
    %926 = vmatprep.mubr.bf16.mxu0 0
    %927 = vmatmul.mubr.bf16.gmra.mxu0 %v826
    %v928 = vpop.f32.mrf.mxu0
    %v929 = vadd.f32 %v824, %v928
    %v930 = vpop.f32.mrf.mxu0
    %v931 = vpop.f32.mrf.mxu0
    %v932 = vadd.f32 %v824, %v931
    %v933 = vpop.f32.mrf.mxu0
    %934 = vmatprep.mubr.bf16.mxu0 0
    %935 = vmatmul.mubr.bf16.gmra.mxu0 %v827
    %v936 = vpop.f32.mrf.mxu0
    %v937 = vadd.f32 %v824, %v936
    %v938 = vpop.f32.mrf.mxu0
    %v939 = vpop.f32.mrf.mxu0
    %v940 = vadd.f32 %v824, %v939
    %v941 = vpop.f32.mrf.mxu0
    %942 = vmatprep.mubr.bf16.mxu0 0
    %943 = vmatmul.mubr.bf16.gmra.mxu0 %v828
    %v944 = vpop.f32.mrf.mxu0
    %v945 = vadd.f32 %v824, %v944
    %v946 = vpop.f32.mrf.mxu0
    %v947 = vpop.f32.mrf.mxu0
    %v948 = vadd.f32 %v824, %v947
    %v949 = vpop.f32.mrf.mxu0
    %950 = vmatprep.mubr.bf16.mxu0 0
    %951 = vmatmul.mubr.bf16.gmra.mxu0 %v829
    %v952 = vpop.f32.mrf.mxu0
    %v953 = vadd.f32 %v824, %v952
    %v954 = vpop.f32.mrf.mxu0
    %v955 = vpop.f32.mrf.mxu0
    %v956 = vadd.f32 %v824, %v955
    %v957 = vpop.f32.mrf.mxu0
    %958 = vmatprep.mubr.bf16.mxu0 0
    %959 = vmatmul.mubr.bf16.gmra.mxu0 %v830
    %v960 = vpop.f32.mrf.mxu0
    %v961 = vadd.f32 %v824, %v960
    %v962 = vpop.f32.mrf.mxu0
    %v963 = vpop.f32.mrf.mxu0
    %v964 = vadd.f32 %v824, %v963
    %v965 = vpop.f32.mrf.mxu0
    %966 = vmatprep.mubr.bf16.mxu0 0
    %967 = vmatmul.mubr.bf16.gmra.mxu0 %v831
    %v968 = vpop.f32.mrf.mxu0
    %v969 = vadd.f32 %v824, %v968
    %v970 = vpop.f32.mrf.mxu0
    %v971 = vpop.f32.mrf.mxu0
    %v972 = vadd.f32 %v824, %v971
    %v973 = vpop.f32.mrf.mxu0
    %974 = vmatprep.mubr.bf16.mxu0 0
    %975 = vmatmul.mubr.bf16.gmra.mxu0 %v832
    %v976 = vpop.f32.mrf.mxu0
    %v977 = vadd.f32 %v824, %v976
    %v978 = vpop.f32.mrf.mxu0
    %v979 = vpop.f32.mrf.mxu0
    %v980 = vadd.f32 %v824, %v979
    %v981 = vpop.f32.mrf.mxu0
    %982 = vmatprep.mubr.bf16.mxu0 0
    %983 = vmatmul.mubr.bf16.gmra.mxu0 %v833
    %v984 = vpop.f32.mrf.mxu0
    %v985 = vadd.f32 %v824, %v984
    %v986 = vpop.f32.mrf.mxu0
    %v987 = vpop.f32.mrf.mxu0
    %v988 = vadd.f32 %v824, %v987
    %v989 = vpop.f32.mrf.mxu0
    %990 = vmatprep.mubr.bf16.mxu0 0
    %991 = vmatmul.mubr.bf16.gmra.mxu0 %v834
    %v992 = vpop.f32.mrf.mxu0
    %v993 = vadd.f32 %v824, %v992
    %v994 = vpop.f32.mrf.mxu0
    %v995 = vpop.f32.mrf.mxu0
    %v996 = vadd.f32 %v824, %v995
    %v997 = vpop.f32.mrf.mxu0
    %998 = vmatprep.mubr.bf16.mxu0 0
    %999 = vmatmul.mubr.bf16.gmra.mxu0 %v835
    %v1000 = vpop.f32.mrf.mxu0
    %v1001 = vadd.f32 %v824, %v1000
    %v1002 = vpop.f32.mrf.mxu0
    %v1003 = vpop.f32.mrf.mxu0
    %v1004 = vadd.f32 %v824, %v1003
    %v1005 = vpop.f32.mrf.mxu0
    %1006 = vmatprep.mubr.bf16.mxu0 0
    %1007 = vmatmul.mubr.bf16.gmra.mxu0 %v836
    %v1008 = vpop.f32.mrf.mxu0
    %v1009 = vadd.f32 %v824, %v1008
    %v1010 = vpop.f32.mrf.mxu0
    %v1011 = vpop.f32.mrf.mxu0
    %v1012 = vadd.f32 %v824, %v1011
    %v1013 = vpop.f32.mrf.mxu0
    %1014 = vmatprep.mubr.bf16.mxu0 0
    %1015 = vmatmul.mubr.bf16.gmra.mxu0 %v837
    %v1016 = vpop.f32.mrf.mxu0
    %v1017 = vadd.f32 %v824, %v1016
    %v1018 = vpop.f32.mrf.mxu0
    %v1019 = vpop.f32.mrf.mxu0
    %v1020 = vpop.f32.mrf.mxu0
    %1021 = vdwg.mxu0
    %vm1022 = vcmp.gt.f32.partialorder %v921, 0.0
    %vm1023 = vcmp.gt.f32.partialorder %v924, 0.0
    %vm1024 = vcmp.gt.f32.partialorder %v929, 0.0
    %vm1025 = vcmp.gt.f32.partialorder %v932, 0.0
    %vm1026 = vcmp.gt.f32.partialorder %v937, 0.0
    %vm1027 = vcmp.gt.f32.partialorder %v940, 0.0
    %vm1028 = vcmp.gt.f32.partialorder %v945, 0.0
    %vm1029 = vcmp.gt.f32.partialorder %v948, 0.0
    %vm1030 = vcmp.gt.f32.partialorder %v953, 0.0
    %vm1031 = vcmp.gt.f32.partialorder %v956, 0.0
    %vm1032 = vcmp.gt.f32.partialorder %v961, 0.0
    %vm1033 = vcmp.gt.f32.partialorder %v964, 0.0
    %vm1034 = vcmp.gt.f32.partialorder %v969, 0.0
    %vm1035 = vcmp.gt.f32.partialorder %v972, 0.0
    %vm1036 = vcmp.gt.f32.partialorder %v977, 0.0
    %vm1037 = vcmp.gt.f32.partialorder %v980, 0.0
    %vm1038 = vcmp.gt.f32.partialorder %v985, 0.0
    %vm1039 = vcmp.gt.f32.partialorder %v988, 0.0
    %vm1040 = vcmp.gt.f32.partialorder %v993, 0.0
    %vm1041 = vcmp.gt.f32.partialorder %v996, 0.0
    %vm1042 = vcmp.gt.f32.partialorder %v1001, 0.0
    %vm1043 = vcmp.gt.f32.partialorder %v1004, 0.0
    %vm1044 = vcmp.gt.f32.partialorder %v1009, 0.0
    %vm1045 = vcmp.gt.f32.partialorder %v1012, 0.0
    %vm1046 = vcmp.gt.f32.partialorder %v1017, 0.0
    %v1047 = vmul.f32 %v921, 0.01
    %v1048 = vmul.f32 %v924, 0.01
    %v1049 = vmul.f32 %v929, 0.01
    %v1050 = vmul.f32 %v932, 0.01
    %v1051 = vmul.f32 %v937, 0.01
    %v1052 = vmul.f32 %v940, 0.01
    %v1053 = vmul.f32 %v945, 0.01
    %v1054 = vmul.f32 %v948, 0.01
    %v1055 = vmul.f32 %v953, 0.01
    %v1056 = vmul.f32 %v956, 0.01
    %v1057 = vmul.f32 %v961, 0.01
    %v1058 = vmul.f32 %v964, 0.01
    %v1059 = vmul.f32 %v969, 0.01
    %v1060 = vmul.f32 %v972, 0.01
    %v1061 = vmul.f32 %v977, 0.01
    %v1062 = vmul.f32 %v980, 0.01
    %v1063 = vmul.f32 %v985, 0.01
    %v1064 = vmul.f32 %v988, 0.01
    %v1065 = vmul.f32 %v993, 0.01
    %v1066 = vmul.f32 %v996, 0.01
    %v1067 = vmul.f32 %v1001, 0.01
    %v1068 = vmul.f32 %v1004, 0.01
    %v1069 = vmul.f32 %v1009, 0.01
    %v1070 = vmul.f32 %v1012, 0.01
    %v1071 = vmul.f32 %v1017, 0.01
    %v1072 = vsel %vm1022, %v921, %v1047
    %v1073 = vsel %vm1023, %v924, %v1048
    %v1074 = vsel %vm1024, %v929, %v1049
    %v1075 = vsel %vm1025, %v932, %v1050
    %v1076 = vsel %vm1026, %v937, %v1051
    %v1077 = vsel %vm1027, %v940, %v1052
    %v1078 = vsel %vm1028, %v945, %v1053
    %v1079 = vsel %vm1029, %v948, %v1054
    %v1080 = vsel %vm1030, %v953, %v1055
    %v1081 = vsel %vm1031, %v956, %v1056
    %v1082 = vsel %vm1032, %v961, %v1057
    %v1083 = vsel %vm1033, %v964, %v1058
    %v1084 = vsel %vm1034, %v969, %v1059
    %v1085 = vsel %vm1035, %v972, %v1060
    %v1086 = vsel %vm1036, %v977, %v1061
    %v1087 = vsel %vm1037, %v980, %v1062
    %v1088 = vsel %vm1038, %v985, %v1063
    %v1089 = vsel %vm1039, %v988, %v1064
    %v1090 = vsel %vm1040, %v993, %v1065
    %v1091 = vsel %vm1041, %v996, %v1066
    %v1092 = vsel %vm1042, %v1001, %v1067
    %v1093 = vsel %vm1043, %v1004, %v1068
    %v1094 = vsel %vm1044, %v1009, %v1069
    %v1095 = vsel %vm1045, %v1012, %v1070
    %v1096 = vsel %vm1046, %v1017, %v1071
    %v1097 = vld [vmem:[#allocation2 + $0x190] sm:$0xf]
    %v1098 = vld [vmem:[#allocation2 + $0x198] sm:$0xf]
    %v1099 = vld [vmem:[#allocation2 + $0x1a0] sm:$0xf]
    %v1100 = vld [vmem:[#allocation2 + $0x1a8] sm:$0xf]
    %v1101 = vld [vmem:[#allocation2 + $0x1b0] sm:$0xf]
    %v1102 = vld [vmem:[#allocation2 + $0x1b8] sm:$0xf]
    %v1103 = vld [vmem:[#allocation2 + $0x1c0] sm:$0xf]
    %v1104 = vld [vmem:[#allocation2 + $0x1c8] sm:$0xf]
    %v1105 = vld [vmem:[%s2 + $0x3] ss:$0 sm:$0xff]
    %v1106 = vpack.c.bf16 %v1073, %v1072
    %v1107 = vpack.c.bf16 %v1075, %v1074
    %v1108 = vpack.c.bf16 %v1077, %v1076
    %v1109 = vpack.c.bf16 %v1079, %v1078
    %v1110 = vpack.c.bf16 %v1081, %v1080
    %v1111 = vpack.c.bf16 %v1083, %v1082
    %v1112 = vpack.c.bf16 %v1085, %v1084
    %v1113 = vpack.c.bf16 %v1087, %v1086
    %v1114 = vpack.c.bf16 %v1089, %v1088
    %v1115 = vpack.c.bf16 %v1091, %v1090
    %v1116 = vpack.c.bf16 %v1093, %v1092
    %v1117 = vpack.c.bf16 %v1095, %v1094
    %v1118 = vpack.c.bf16 %v1096, %v1096
    %v1127 = vunpack.c.l.b16 %v1097
    %v1128 = vunpack.c.l.b16 %v1098
    %v1129 = vunpack.c.l.b16 %v1099
    %v1130 = vunpack.c.l.b16 %v1100
    %v1131 = vunpack.c.l.b16 %v1101
    %v1132 = vunpack.c.l.b16 %v1102
    %v1133 = vunpack.c.l.b16 %v1103
    %v1134 = vunpack.c.l.b16 %v1104
    %v1135 = vpack.c.b16 %v1128, %v1127
    %v1136 = vpack.c.b16 %v1130, %v1129
    %v1137 = vpack.c.b16 %v1132, %v1131
    %v1138 = vpack.c.b16 %v1134, %v1133
    %vm1143 = vcmask 523264
    %v1145 = vsel %vm1143, %v1106, 0
    %v1148 = vsel %vm1143, %v1107, 0
    %v1151 = vsel %vm1143, %v1108, 0
    %v1154 = vsel %vm1143, %v1109, 0
    %v1157 = vsel %vm1143, %v1110, 0
    %v1160 = vsel %vm1143, %v1111, 0
    %v1163 = vsel %vm1143, %v1112, 0
    %v1166 = vsel %vm1143, %v1113, 0
    %v1169 = vsel %vm1143, %v1114, 0
    %v1172 = vsel %vm1143, %v1115, 0
    %v1175 = vsel %vm1143, %v1116, 0
    %v1178 = vsel %vm1143, %v1117, 0
    %v1181 = vsel %vm1143, %v1118, 0
    %1183 = vmatprep.subr.bf16.mxu0 0
    %1184 = vmatpush1.bf16.msra.mxu0 0
    %1185 = vmatprep.subr.bf16.mxu0 0
    %1186 = vmatpush1.bf16.msra.mxu0 0
    %1187 = vmatprep.subr.bf16.mxu0 0
    %1188 = vmatpush1.bf16.msra.mxu0 0
    %1189 = vmatprep.subr.bf16.mxu0 0
    %1190 = vmatpush1.bf16.msra.mxu0 0
    %1191 = vmatprep.subr.bf16.mxu0 0
    %1192 = vmatpush1.bf16.msra.mxu0 %v1138
    %1193 = vmatprep.subr.bf16.mxu0 0
    %1194 = vmatpush1.bf16.msra.mxu0 %v1137
    %1195 = vmatprep.subr.bf16.mxu0 0
    %1196 = vmatpush1.bf16.msra.mxu0 %v1136
    %1197 = vmatprep.subr.bf16.mxu0 0
    %1198 = vmatpush1.bf16.msra.mxu0 %v1135
    %1199 = vmatprep.subr.bf16.mxu0 0
    %1200 = vmatpush2.bf16.msra.mxu0 0
    %1201 = vmatprep.subr.bf16.mxu0 0
    %1202 = vmatpush2.bf16.msra.mxu0 0
    %1203 = vmatprep.subr.bf16.mxu0 0
    %1204 = vmatpush2.bf16.msra.mxu0 0
    %1205 = vmatprep.subr.bf16.mxu0 0
    %1206 = vmatpush2.bf16.msra.mxu0 0
    %1207 = vmatprep.subr.bf16.mxu0 0
    %1208 = vmatpush2.bf16.msra.mxu0 0
    %1209 = vmatprep.subr.bf16.mxu0 0
    %1210 = vmatpush2.bf16.msra.mxu0 0
    %1211 = vmatprep.subr.bf16.mxu0 0
    %1212 = vmatpush2.bf16.msra.mxu0 0
    %1213 = vmatprep.subr.bf16.mxu0 0
    %1214 = vmatpush2.bf16.msra.mxu0 0
    %1215 = vmatprep.mubr.bf16.mxu0 0
    %1216 = vmatmul.mubr.bf16.gmra.mxu0 %v1145
    %v1217 = vpop.f32.mrf.mxu0
    %v1218 = vadd.f32 %v1105, %v1217
    %v1219 = vpop.f32.mrf.mxu0
    %v1220 = vpop.f32.mrf.mxu0
    %v1221 = vadd.f32 %v1105, %v1220
    %v1222 = vpop.f32.mrf.mxu0
    %1223 = vmatprep.mubr.bf16.mxu0 0
    %1224 = vmatmul.mubr.bf16.gmra.mxu0 %v1148
    %v1225 = vpop.f32.mrf.mxu0
    %v1226 = vadd.f32 %v1105, %v1225
    %v1227 = vpop.f32.mrf.mxu0
    %v1228 = vpop.f32.mrf.mxu0
    %v1229 = vadd.f32 %v1105, %v1228
    %v1230 = vpop.f32.mrf.mxu0
    %1231 = vmatprep.mubr.bf16.mxu0 0
    %1232 = vmatmul.mubr.bf16.gmra.mxu0 %v1151
    %v1233 = vpop.f32.mrf.mxu0
    %v1234 = vadd.f32 %v1105, %v1233
    %v1235 = vpop.f32.mrf.mxu0
    %v1236 = vpop.f32.mrf.mxu0
    %v1237 = vadd.f32 %v1105, %v1236
    %v1238 = vpop.f32.mrf.mxu0
    %1239 = vmatprep.mubr.bf16.mxu0 0
    %1240 = vmatmul.mubr.bf16.gmra.mxu0 %v1154
    %v1241 = vpop.f32.mrf.mxu0
    %v1242 = vadd.f32 %v1105, %v1241
    %v1243 = vpop.f32.mrf.mxu0
    %v1244 = vpop.f32.mrf.mxu0
    %v1245 = vadd.f32 %v1105, %v1244
    %v1246 = vpop.f32.mrf.mxu0
    %1247 = vmatprep.mubr.bf16.mxu0 0
    %1248 = vmatmul.mubr.bf16.gmra.mxu0 %v1157
    %v1249 = vpop.f32.mrf.mxu0
    %v1250 = vadd.f32 %v1105, %v1249
    %v1251 = vpop.f32.mrf.mxu0
    %v1252 = vpop.f32.mrf.mxu0
    %v1253 = vadd.f32 %v1105, %v1252
    %v1254 = vpop.f32.mrf.mxu0
    %1255 = vmatprep.mubr.bf16.mxu0 0
    %1256 = vmatmul.mubr.bf16.gmra.mxu0 %v1160
    %v1257 = vpop.f32.mrf.mxu0
    %v1258 = vadd.f32 %v1105, %v1257
    %v1259 = vpop.f32.mrf.mxu0
    %v1260 = vpop.f32.mrf.mxu0
    %v1261 = vadd.f32 %v1105, %v1260
    %v1262 = vpop.f32.mrf.mxu0
    %1263 = vmatprep.mubr.bf16.mxu0 0
    %1264 = vmatmul.mubr.bf16.gmra.mxu0 %v1163
    %v1265 = vpop.f32.mrf.mxu0
    %v1266 = vadd.f32 %v1105, %v1265
    %v1267 = vpop.f32.mrf.mxu0
    %v1268 = vpop.f32.mrf.mxu0
    %v1269 = vadd.f32 %v1105, %v1268
    %v1270 = vpop.f32.mrf.mxu0
    %1271 = vmatprep.mubr.bf16.mxu0 0
    %1272 = vmatmul.mubr.bf16.gmra.mxu0 %v1166
    %v1273 = vpop.f32.mrf.mxu0
    %v1274 = vadd.f32 %v1105, %v1273
    %v1275 = vpop.f32.mrf.mxu0
    %v1276 = vpop.f32.mrf.mxu0
    %v1277 = vadd.f32 %v1105, %v1276
    %v1278 = vpop.f32.mrf.mxu0
    %1279 = vmatprep.mubr.bf16.mxu0 0
    %1280 = vmatmul.mubr.bf16.gmra.mxu0 %v1169
    %v1281 = vpop.f32.mrf.mxu0
    %v1282 = vadd.f32 %v1105, %v1281
    %v1283 = vpop.f32.mrf.mxu0
    %v1284 = vpop.f32.mrf.mxu0
    %v1285 = vadd.f32 %v1105, %v1284
    %v1286 = vpop.f32.mrf.mxu0
    %1287 = vmatprep.mubr.bf16.mxu0 0
    %1288 = vmatmul.mubr.bf16.gmra.mxu0 %v1172
    %v1289 = vpop.f32.mrf.mxu0
    %v1290 = vadd.f32 %v1105, %v1289
    %v1291 = vpop.f32.mrf.mxu0
    %v1292 = vpop.f32.mrf.mxu0
    %v1293 = vadd.f32 %v1105, %v1292
    %v1294 = vpop.f32.mrf.mxu0
    %1295 = vmatprep.mubr.bf16.mxu0 0
    %1296 = vmatmul.mubr.bf16.gmra.mxu0 %v1175
    %v1297 = vpop.f32.mrf.mxu0
    %v1298 = vadd.f32 %v1105, %v1297
    %v1299 = vpop.f32.mrf.mxu0
    %v1300 = vpop.f32.mrf.mxu0
    %v1301 = vadd.f32 %v1105, %v1300
    %v1302 = vpop.f32.mrf.mxu0
    %1303 = vmatprep.mubr.bf16.mxu0 0
    %1304 = vmatmul.mubr.bf16.gmra.mxu0 %v1178
    %v1305 = vpop.f32.mrf.mxu0
    %v1306 = vadd.f32 %v1105, %v1305
    %v1307 = vpop.f32.mrf.mxu0
    %v1308 = vpop.f32.mrf.mxu0
    %v1309 = vadd.f32 %v1105, %v1308
    %v1310 = vpop.f32.mrf.mxu0
    %1311 = vmatprep.mubr.bf16.mxu0 0
    %1312 = vmatmul.mubr.bf16.gmra.mxu0 %v1181
    %v1313 = vpop.f32.mrf.mxu0
    %v1314 = vadd.f32 %v1105, %v1313
    %v1315 = vpop.f32.mrf.mxu0
    %v1316 = vpop.f32.mrf.mxu0
    %v1317 = vpop.f32.mrf.mxu0
    %1318 = vdwg.mxu0
    %vm1319 = vcmp.gt.f32.partialorder %v1218, 0.0
    %vm1320 = vcmp.gt.f32.partialorder %v1221, 0.0
    %vm1321 = vcmp.gt.f32.partialorder %v1226, 0.0
    %vm1322 = vcmp.gt.f32.partialorder %v1229, 0.0
    %vm1323 = vcmp.gt.f32.partialorder %v1234, 0.0
    %vm1324 = vcmp.gt.f32.partialorder %v1237, 0.0
    %vm1325 = vcmp.gt.f32.partialorder %v1242, 0.0
    %vm1326 = vcmp.gt.f32.partialorder %v1245, 0.0
    %vm1327 = vcmp.gt.f32.partialorder %v1250, 0.0
    %vm1328 = vcmp.gt.f32.partialorder %v1253, 0.0
    %vm1329 = vcmp.gt.f32.partialorder %v1258, 0.0
    %vm1330 = vcmp.gt.f32.partialorder %v1261, 0.0
    %vm1331 = vcmp.gt.f32.partialorder %v1266, 0.0
    %vm1332 = vcmp.gt.f32.partialorder %v1269, 0.0
    %vm1333 = vcmp.gt.f32.partialorder %v1274, 0.0
    %vm1334 = vcmp.gt.f32.partialorder %v1277, 0.0
    %vm1335 = vcmp.gt.f32.partialorder %v1282, 0.0
    %vm1336 = vcmp.gt.f32.partialorder %v1285, 0.0
    %vm1337 = vcmp.gt.f32.partialorder %v1290, 0.0
    %vm1338 = vcmp.gt.f32.partialorder %v1293, 0.0
    %vm1339 = vcmp.gt.f32.partialorder %v1298, 0.0
    %vm1340 = vcmp.gt.f32.partialorder %v1301, 0.0
    %vm1341 = vcmp.gt.f32.partialorder %v1306, 0.0
    %vm1342 = vcmp.gt.f32.partialorder %v1309, 0.0
    %vm1343 = vcmp.gt.f32.partialorder %v1314, 0.0
    %v1344 = vmul.f32 %v1218, 0.01
    %v1345 = vmul.f32 %v1221, 0.01
    %v1346 = vmul.f32 %v1226, 0.01
    %v1347 = vmul.f32 %v1229, 0.01
    %v1348 = vmul.f32 %v1234, 0.01
    %v1349 = vmul.f32 %v1237, 0.01
    %v1350 = vmul.f32 %v1242, 0.01
    %v1351 = vmul.f32 %v1245, 0.01
    %v1352 = vmul.f32 %v1250, 0.01
    %v1353 = vmul.f32 %v1253, 0.01
    %v1354 = vmul.f32 %v1258, 0.01
    %v1355 = vmul.f32 %v1261, 0.01
    %v1356 = vmul.f32 %v1266, 0.01
    %v1357 = vmul.f32 %v1269, 0.01
    %v1358 = vmul.f32 %v1274, 0.01
    %v1359 = vmul.f32 %v1277, 0.01
    %v1360 = vmul.f32 %v1282, 0.01
    %v1361 = vmul.f32 %v1285, 0.01
    %v1362 = vmul.f32 %v1290, 0.01
    %v1363 = vmul.f32 %v1293, 0.01
    %v1364 = vmul.f32 %v1298, 0.01
    %v1365 = vmul.f32 %v1301, 0.01
    %v1366 = vmul.f32 %v1306, 0.01
    %v1367 = vmul.f32 %v1309, 0.01
    %v1368 = vmul.f32 %v1314, 0.01
    %v1369 = vsel %vm1319, %v1218, %v1344
    %v1370 = vsel %vm1320, %v1221, %v1345
    %v1371 = vsel %vm1321, %v1226, %v1346
    %v1372 = vsel %vm1322, %v1229, %v1347
    %v1373 = vsel %vm1323, %v1234, %v1348
    %v1374 = vsel %vm1324, %v1237, %v1349
    %v1375 = vsel %vm1325, %v1242, %v1350
    %v1376 = vsel %vm1326, %v1245, %v1351
    %v1377 = vsel %vm1327, %v1250, %v1352
    %v1378 = vsel %vm1328, %v1253, %v1353
    %v1379 = vsel %vm1329, %v1258, %v1354
    %v1380 = vsel %vm1330, %v1261, %v1355
    %v1381 = vsel %vm1331, %v1266, %v1356
    %v1382 = vsel %vm1332, %v1269, %v1357
    %v1383 = vsel %vm1333, %v1274, %v1358
    %v1384 = vsel %vm1334, %v1277, %v1359
    %v1385 = vsel %vm1335, %v1282, %v1360
    %v1386 = vsel %vm1336, %v1285, %v1361
    %v1387 = vsel %vm1337, %v1290, %v1362
    %v1388 = vsel %vm1338, %v1293, %v1363
    %v1389 = vsel %vm1339, %v1298, %v1364
    %v1390 = vsel %vm1340, %v1301, %v1365
    %v1391 = vsel %vm1341, %v1306, %v1366
    %v1392 = vsel %vm1342, %v1309, %v1367
    %v1393 = vsel %vm1343, %v1314, %v1368
    %v1394 = vld [vmem:[#allocation2 + $0x1d0] sm:$0xf]
    %v1395 = vld [vmem:[#allocation2 + $0x1d8] sm:$0xf]
    %v1396 = vld [vmem:[#allocation2 + $0x1e0] sm:$0xf]
    %v1397 = vld [vmem:[#allocation2 + $0x1e8] sm:$0xf]
    %v1398 = vld [vmem:[%s2 + $0x4] ss:$0 sm:$0xff]
    %v1399 = vpack.c.bf16 %v1370, %v1369
    %v1400 = vpack.c.bf16 %v1372, %v1371
    %v1401 = vpack.c.bf16 %v1374, %v1373
    %v1402 = vpack.c.bf16 %v1376, %v1375
    %v1403 = vpack.c.bf16 %v1378, %v1377
    %v1404 = vpack.c.bf16 %v1380, %v1379
    %v1405 = vpack.c.bf16 %v1382, %v1381
    %v1406 = vpack.c.bf16 %v1384, %v1383
    %v1407 = vpack.c.bf16 %v1386, %v1385
    %v1408 = vpack.c.bf16 %v1388, %v1387
    %v1409 = vpack.c.bf16 %v1390, %v1389
    %v1410 = vpack.c.bf16 %v1392, %v1391
    %v1411 = vpack.c.bf16 %v1393, %v1393
    %v1416 = vunpack.c.l.b16 %v1394
    %v1417 = vunpack.c.l.b16 %v1395
    %v1418 = vunpack.c.l.b16 %v1396
    %v1419 = vunpack.c.l.b16 %v1397
    %v1420 = vpack.c.b16 %v1417, %v1416
    %v1421 = vpack.c.b16 %v1419, %v1418
    %vm1424 = vcmask 261120
    %v1426 = vsel %vm1424, %v1399, 0
    %v1429 = vsel %vm1424, %v1400, 0
    %v1432 = vsel %vm1424, %v1401, 0
    %v1435 = vsel %vm1424, %v1402, 0
    %v1438 = vsel %vm1424, %v1403, 0
    %v1441 = vsel %vm1424, %v1404, 0
    %v1444 = vsel %vm1424, %v1405, 0
    %v1447 = vsel %vm1424, %v1406, 0
    %v1450 = vsel %vm1424, %v1407, 0
    %v1453 = vsel %vm1424, %v1408, 0
    %v1456 = vsel %vm1424, %v1409, 0
    %v1459 = vsel %vm1424, %v1410, 0
    %v1462 = vsel %vm1424, %v1411, 0
    %1464 = vmatprep.subr.bf16.mxu0 0
    %1465 = vmatpush1.bf16.msra.mxu0 0
    %1466 = vmatprep.subr.bf16.mxu0 0
    %1467 = vmatpush1.bf16.msra.mxu0 0
    %1468 = vmatprep.subr.bf16.mxu0 0
    %1469 = vmatpush1.bf16.msra.mxu0 0
    %1470 = vmatprep.subr.bf16.mxu0 0
    %1471 = vmatpush1.bf16.msra.mxu0 0
    %1472 = vmatprep.subr.bf16.mxu0 0
    %1473 = vmatpush1.bf16.msra.mxu0 0
    %1474 = vmatprep.subr.bf16.mxu0 0
    %1475 = vmatpush1.bf16.msra.mxu0 0
    %1476 = vmatprep.subr.bf16.mxu0 0
    %1477 = vmatpush1.bf16.msra.mxu0 %v1421
    %1478 = vmatprep.subr.bf16.mxu0 0
    %1479 = vmatpush1.bf16.msra.mxu0 %v1420
    %1480 = vmatprep.subr.bf16.mxu0 0
    %1481 = vmatpush2.bf16.msra.mxu0 0
    %1482 = vmatprep.subr.bf16.mxu0 0
    %1483 = vmatpush2.bf16.msra.mxu0 0
    %1484 = vmatprep.subr.bf16.mxu0 0
    %1485 = vmatpush2.bf16.msra.mxu0 0
    %1486 = vmatprep.subr.bf16.mxu0 0
    %1487 = vmatpush2.bf16.msra.mxu0 0
    %1488 = vmatprep.subr.bf16.mxu0 0
    %1489 = vmatpush2.bf16.msra.mxu0 0
    %1490 = vmatprep.subr.bf16.mxu0 0
    %1491 = vmatpush2.bf16.msra.mxu0 0
    %1492 = vmatprep.subr.bf16.mxu0 0
    %1493 = vmatpush2.bf16.msra.mxu0 0
    %1494 = vmatprep.subr.bf16.mxu0 0
    %1495 = vmatpush2.bf16.msra.mxu0 0
    %1496 = vmatprep.mubr.bf16.mxu0 0
    %1497 = vmatmul.mubr.bf16.gmra.mxu0 %v1426
    %v1498 = vpop.f32.mrf.mxu0
    %v1499 = vadd.f32 %v1398, %v1498
    %v1500 = vpop.f32.mrf.mxu0
    %v1501 = vpop.f32.mrf.mxu0
    %v1502 = vadd.f32 %v1398, %v1501
    %v1503 = vpop.f32.mrf.mxu0
    %1504 = vmatprep.mubr.bf16.mxu0 0
    %1505 = vmatmul.mubr.bf16.gmra.mxu0 %v1429
    %v1506 = vpop.f32.mrf.mxu0
    %v1507 = vadd.f32 %v1398, %v1506
    %v1508 = vpop.f32.mrf.mxu0
    %v1509 = vpop.f32.mrf.mxu0
    %v1510 = vadd.f32 %v1398, %v1509
    %v1511 = vpop.f32.mrf.mxu0
    %1512 = vmatprep.mubr.bf16.mxu0 0
    %1513 = vmatmul.mubr.bf16.gmra.mxu0 %v1432
    %v1514 = vpop.f32.mrf.mxu0
    %v1515 = vadd.f32 %v1398, %v1514
    %v1516 = vpop.f32.mrf.mxu0
    %v1517 = vpop.f32.mrf.mxu0
    %v1518 = vadd.f32 %v1398, %v1517
    %v1519 = vpop.f32.mrf.mxu0
    %1520 = vmatprep.mubr.bf16.mxu0 0
    %1521 = vmatmul.mubr.bf16.gmra.mxu0 %v1435
    %v1522 = vpop.f32.mrf.mxu0
    %v1523 = vadd.f32 %v1398, %v1522
    %v1524 = vpop.f32.mrf.mxu0
    %v1525 = vpop.f32.mrf.mxu0
    %v1526 = vadd.f32 %v1398, %v1525
    %v1527 = vpop.f32.mrf.mxu0
    %1528 = vmatprep.mubr.bf16.mxu0 0
    %1529 = vmatmul.mubr.bf16.gmra.mxu0 %v1438
    %v1530 = vpop.f32.mrf.mxu0
    %v1531 = vadd.f32 %v1398, %v1530
    %v1532 = vpop.f32.mrf.mxu0
    %v1533 = vpop.f32.mrf.mxu0
    %v1534 = vadd.f32 %v1398, %v1533
    %v1535 = vpop.f32.mrf.mxu0
    %1536 = vmatprep.mubr.bf16.mxu0 0
    %1537 = vmatmul.mubr.bf16.gmra.mxu0 %v1441
    %v1538 = vpop.f32.mrf.mxu0
    %v1539 = vadd.f32 %v1398, %v1538
    %v1540 = vpop.f32.mrf.mxu0
    %v1541 = vpop.f32.mrf.mxu0
    %v1542 = vadd.f32 %v1398, %v1541
    %v1543 = vpop.f32.mrf.mxu0
    %1544 = vmatprep.mubr.bf16.mxu0 0
    %1545 = vmatmul.mubr.bf16.gmra.mxu0 %v1444
    %v1546 = vpop.f32.mrf.mxu0
    %v1547 = vadd.f32 %v1398, %v1546
    %v1548 = vpop.f32.mrf.mxu0
    %v1549 = vpop.f32.mrf.mxu0
    %v1550 = vadd.f32 %v1398, %v1549
    %v1551 = vpop.f32.mrf.mxu0
    %1552 = vmatprep.mubr.bf16.mxu0 0
    %1553 = vmatmul.mubr.bf16.gmra.mxu0 %v1447
    %v1554 = vpop.f32.mrf.mxu0
    %v1555 = vadd.f32 %v1398, %v1554
    %v1556 = vpop.f32.mrf.mxu0
    %v1557 = vpop.f32.mrf.mxu0
    %v1558 = vadd.f32 %v1398, %v1557
    %v1559 = vpop.f32.mrf.mxu0
    %1560 = vmatprep.mubr.bf16.mxu0 0
    %1561 = vmatmul.mubr.bf16.gmra.mxu0 %v1450
    %v1562 = vpop.f32.mrf.mxu0
    %v1563 = vadd.f32 %v1398, %v1562
    %v1564 = vpop.f32.mrf.mxu0
    %v1565 = vpop.f32.mrf.mxu0
    %v1566 = vadd.f32 %v1398, %v1565
    %v1567 = vpop.f32.mrf.mxu0
    %1568 = vmatprep.mubr.bf16.mxu0 0
    %1569 = vmatmul.mubr.bf16.gmra.mxu0 %v1453
    %v1570 = vpop.f32.mrf.mxu0
    %v1571 = vadd.f32 %v1398, %v1570
    %v1572 = vpop.f32.mrf.mxu0
    %v1573 = vpop.f32.mrf.mxu0
    %v1574 = vadd.f32 %v1398, %v1573
    %v1575 = vpop.f32.mrf.mxu0
    %1576 = vmatprep.mubr.bf16.mxu0 0
    %1577 = vmatmul.mubr.bf16.gmra.mxu0 %v1456
    %v1578 = vpop.f32.mrf.mxu0
    %v1579 = vadd.f32 %v1398, %v1578
    %v1580 = vpop.f32.mrf.mxu0
    %v1581 = vpop.f32.mrf.mxu0
    %v1582 = vadd.f32 %v1398, %v1581
    %v1583 = vpop.f32.mrf.mxu0
    %1584 = vmatprep.mubr.bf16.mxu0 0
    %1585 = vmatmul.mubr.bf16.gmra.mxu0 %v1459
    %v1586 = vpop.f32.mrf.mxu0
    %v1587 = vadd.f32 %v1398, %v1586
    %v1588 = vpop.f32.mrf.mxu0
    %v1589 = vpop.f32.mrf.mxu0
    %v1590 = vadd.f32 %v1398, %v1589
    %v1591 = vpop.f32.mrf.mxu0
    %1592 = vmatprep.mubr.bf16.mxu0 0
    %1593 = vmatmul.mubr.bf16.gmra.mxu0 %v1462
    %v1594 = vpop.f32.mrf.mxu0
    %v1595 = vadd.f32 %v1398, %v1594
    %v1596 = vpop.f32.mrf.mxu0
    %v1597 = vpop.f32.mrf.mxu0
    %v1598 = vpop.f32.mrf.mxu0
    %1599 = vdwg.mxu0
    %vm1600 = vcmp.gt.f32.partialorder %v1499, 0.0
    %vm1601 = vcmp.gt.f32.partialorder %v1502, 0.0
    %vm1602 = vcmp.gt.f32.partialorder %v1507, 0.0
    %vm1603 = vcmp.gt.f32.partialorder %v1510, 0.0
    %vm1604 = vcmp.gt.f32.partialorder %v1515, 0.0
    %vm1605 = vcmp.gt.f32.partialorder %v1518, 0.0
    %vm1606 = vcmp.gt.f32.partialorder %v1523, 0.0
    %vm1607 = vcmp.gt.f32.partialorder %v1526, 0.0
    %vm1608 = vcmp.gt.f32.partialorder %v1531, 0.0
    %vm1609 = vcmp.gt.f32.partialorder %v1534, 0.0
    %vm1610 = vcmp.gt.f32.partialorder %v1539, 0.0
    %vm1611 = vcmp.gt.f32.partialorder %v1542, 0.0
    %vm1612 = vcmp.gt.f32.partialorder %v1547, 0.0
    %vm1613 = vcmp.gt.f32.partialorder %v1550, 0.0
    %vm1614 = vcmp.gt.f32.partialorder %v1555, 0.0
    %vm1615 = vcmp.gt.f32.partialorder %v1558, 0.0
    %vm1616 = vcmp.gt.f32.partialorder %v1563, 0.0
    %vm1617 = vcmp.gt.f32.partialorder %v1566, 0.0
    %vm1618 = vcmp.gt.f32.partialorder %v1571, 0.0
    %vm1619 = vcmp.gt.f32.partialorder %v1574, 0.0
    %vm1620 = vcmp.gt.f32.partialorder %v1579, 0.0
    %vm1621 = vcmp.gt.f32.partialorder %v1582, 0.0
    %vm1622 = vcmp.gt.f32.partialorder %v1587, 0.0
    %vm1623 = vcmp.gt.f32.partialorder %v1590, 0.0
    %vm1624 = vcmp.gt.f32.partialorder %v1595, 0.0
    %v1625 = vmul.f32 %v1499, 0.01
    %v1626 = vmul.f32 %v1502, 0.01
    %v1627 = vmul.f32 %v1507, 0.01
    %v1628 = vmul.f32 %v1510, 0.01
    %v1629 = vmul.f32 %v1515, 0.01
    %v1630 = vmul.f32 %v1518, 0.01
    %v1631 = vmul.f32 %v1523, 0.01
    %v1632 = vmul.f32 %v1526, 0.01
    %v1633 = vmul.f32 %v1531, 0.01
    %v1634 = vmul.f32 %v1534, 0.01
    %v1635 = vmul.f32 %v1539, 0.01
    %v1636 = vmul.f32 %v1542, 0.01
    %v1637 = vmul.f32 %v1547, 0.01
    %v1638 = vmul.f32 %v1550, 0.01
    %v1639 = vmul.f32 %v1555, 0.01
    %v1640 = vmul.f32 %v1558, 0.01
    %v1641 = vmul.f32 %v1563, 0.01
    %v1642 = vmul.f32 %v1566, 0.01
    %v1643 = vmul.f32 %v1571, 0.01
    %v1644 = vmul.f32 %v1574, 0.01
    %v1645 = vmul.f32 %v1579, 0.01
    %v1646 = vmul.f32 %v1582, 0.01
    %v1647 = vmul.f32 %v1587, 0.01
    %v1648 = vmul.f32 %v1590, 0.01
    %v1649 = vmul.f32 %v1595, 0.01
    %v1650 = vsel %vm1600, %v1499, %v1625
    %v1651 = vsel %vm1601, %v1502, %v1626
    %v1652 = vsel %vm1602, %v1507, %v1627
    %v1653 = vsel %vm1603, %v1510, %v1628
    %v1654 = vsel %vm1604, %v1515, %v1629
    %v1655 = vsel %vm1605, %v1518, %v1630
    %v1656 = vsel %vm1606, %v1523, %v1631
    %v1657 = vsel %vm1607, %v1526, %v1632
    %v1658 = vsel %vm1608, %v1531, %v1633
    %v1659 = vsel %vm1609, %v1534, %v1634
    %v1660 = vsel %vm1610, %v1539, %v1635
    %v1661 = vsel %vm1611, %v1542, %v1636
    %v1662 = vsel %vm1612, %v1547, %v1637
    %v1663 = vsel %vm1613, %v1550, %v1638
    %v1664 = vsel %vm1614, %v1555, %v1639
    %v1665 = vsel %vm1615, %v1558, %v1640
    %v1666 = vsel %vm1616, %v1563, %v1641
    %v1667 = vsel %vm1617, %v1566, %v1642
    %v1668 = vsel %vm1618, %v1571, %v1643
    %v1669 = vsel %vm1619, %v1574, %v1644
    %v1670 = vsel %vm1620, %v1579, %v1645
    %v1671 = vsel %vm1621, %v1582, %v1646
    %v1672 = vsel %vm1622, %v1587, %v1647
    %v1673 = vsel %vm1623, %v1590, %v1648
    %v1674 = vsel %vm1624, %v1595, %v1649
    %v1675 = vld [vmem:[#allocation2 + $0x1f0] sm:$0xf]
    %v1676 = vld [vmem:[#allocation2 + $0x1f8] sm:$0xf]
    %v1677 = vld [vmem:[%s2 + $0x5] ss:$0 sm:$0xff]
    %v1678 = vpack.c.bf16 %v1651, %v1650
    %v1679 = vpack.c.bf16 %v1653, %v1652
    %v1680 = vpack.c.bf16 %v1655, %v1654
    %v1681 = vpack.c.bf16 %v1657, %v1656
    %v1682 = vpack.c.bf16 %v1659, %v1658
    %v1683 = vpack.c.bf16 %v1661, %v1660
    %v1684 = vpack.c.bf16 %v1663, %v1662
    %v1685 = vpack.c.bf16 %v1665, %v1664
    %v1686 = vpack.c.bf16 %v1667, %v1666
    %v1687 = vpack.c.bf16 %v1669, %v1668
    %v1688 = vpack.c.bf16 %v1671, %v1670
    %v1689 = vpack.c.bf16 %v1673, %v1672
    %v1690 = vpack.c.bf16 %v1674, %v1674
    %v1693 = vunpack.c.l.b16 %v1675
    %v1694 = vunpack.c.l.b16 %v1676
    %v1695 = vpack.c.b16 %v1694, %v1693
    %v1698 = vsel %vm91, %v1678, 0
    %v1701 = vsel %vm91, %v1679, 0
    %v1704 = vsel %vm91, %v1680, 0
    %v1707 = vsel %vm91, %v1681, 0
    %v1710 = vsel %vm91, %v1682, 0
    %v1713 = vsel %vm91, %v1683, 0
    %v1716 = vsel %vm91, %v1684, 0
    %v1719 = vsel %vm91, %v1685, 0
    %v1722 = vsel %vm91, %v1686, 0
    %v1725 = vsel %vm91, %v1687, 0
    %v1728 = vsel %vm91, %v1688, 0
    %v1731 = vsel %vm91, %v1689, 0
    %v1734 = vsel %vm91, %v1690, 0
    %1736 = vmatprep.subr.bf16.mxu0 0
    %1737 = vmatpush1.bf16.msra.mxu0 0
    %1738 = vmatprep.subr.bf16.mxu0 0
    %1739 = vmatpush1.bf16.msra.mxu0 0
    %1740 = vmatprep.subr.bf16.mxu0 0
    %1741 = vmatpush1.bf16.msra.mxu0 0
    %1742 = vmatprep.subr.bf16.mxu0 0
    %1743 = vmatpush1.bf16.msra.mxu0 0
    %1744 = vmatprep.subr.bf16.mxu0 0
    %1745 = vmatpush1.bf16.msra.mxu0 0
    %1746 = vmatprep.subr.bf16.mxu0 0
    %1747 = vmatpush1.bf16.msra.mxu0 0
    %1748 = vmatprep.subr.bf16.mxu0 0
    %1749 = vmatpush1.bf16.msra.mxu0 0
    %1750 = vmatprep.subr.bf16.mxu0 0
    %1751 = vmatpush1.bf16.msra.mxu0 %v1695
    %1752 = vmatprep.subr.bf16.mxu0 0
    %1753 = vmatpush2.bf16.msra.mxu0 0
    %1754 = vmatprep.subr.bf16.mxu0 0
    %1755 = vmatpush2.bf16.msra.mxu0 0
    %1756 = vmatprep.subr.bf16.mxu0 0
    %1757 = vmatpush2.bf16.msra.mxu0 0
    %1758 = vmatprep.subr.bf16.mxu0 0
    %1759 = vmatpush2.bf16.msra.mxu0 0
    %1760 = vmatprep.subr.bf16.mxu0 0
    %1761 = vmatpush2.bf16.msra.mxu0 0
    %1762 = vmatprep.subr.bf16.mxu0 0
    %1763 = vmatpush2.bf16.msra.mxu0 0
    %1764 = vmatprep.subr.bf16.mxu0 0
    %1765 = vmatpush2.bf16.msra.mxu0 0
    %1766 = vmatprep.subr.bf16.mxu0 0
    %1767 = vmatpush2.bf16.msra.mxu0 0
    %1768 = vmatprep.mubr.bf16.mxu0 0
    %1769 = vmatmul.mubr.bf16.gmra.mxu0 %v1698
    %v1770 = vpop.f32.mrf.mxu0
    %v1771 = vadd.f32 %v1677, %v1770
    %v1772 = vpop.f32.mrf.mxu0
    %v1773 = vpop.f32.mrf.mxu0
    %v1774 = vadd.f32 %v1677, %v1773
    %v1775 = vpop.f32.mrf.mxu0
    %1776 = vmatprep.mubr.bf16.mxu0 0
    %1777 = vmatmul.mubr.bf16.gmra.mxu0 %v1701
    %v1778 = vpop.f32.mrf.mxu0
    %v1779 = vadd.f32 %v1677, %v1778
    %v1780 = vpop.f32.mrf.mxu0
    %v1781 = vpop.f32.mrf.mxu0
    %v1782 = vadd.f32 %v1677, %v1781
    %v1783 = vpop.f32.mrf.mxu0
    %1784 = vmatprep.mubr.bf16.mxu0 0
    %1785 = vmatmul.mubr.bf16.gmra.mxu0 %v1704
    %v1786 = vpop.f32.mrf.mxu0
    %v1787 = vadd.f32 %v1677, %v1786
    %v1788 = vpop.f32.mrf.mxu0
    %v1789 = vpop.f32.mrf.mxu0
    %v1790 = vadd.f32 %v1677, %v1789
    %v1791 = vpop.f32.mrf.mxu0
    %1792 = vmatprep.mubr.bf16.mxu0 0
    %1793 = vmatmul.mubr.bf16.gmra.mxu0 %v1707
    %v1794 = vpop.f32.mrf.mxu0
    %v1795 = vadd.f32 %v1677, %v1794
    %v1796 = vpop.f32.mrf.mxu0
    %v1797 = vpop.f32.mrf.mxu0
    %v1798 = vadd.f32 %v1677, %v1797
    %v1799 = vpop.f32.mrf.mxu0
    %1800 = vmatprep.mubr.bf16.mxu0 0
    %1801 = vmatmul.mubr.bf16.gmra.mxu0 %v1710
    %v1802 = vpop.f32.mrf.mxu0
    %v1803 = vadd.f32 %v1677, %v1802
    %v1804 = vpop.f32.mrf.mxu0
    %v1805 = vpop.f32.mrf.mxu0
    %v1806 = vadd.f32 %v1677, %v1805
    %v1807 = vpop.f32.mrf.mxu0
    %1808 = vmatprep.mubr.bf16.mxu0 0
    %1809 = vmatmul.mubr.bf16.gmra.mxu0 %v1713
    %v1810 = vpop.f32.mrf.mxu0
    %v1811 = vadd.f32 %v1677, %v1810
    %v1812 = vpop.f32.mrf.mxu0
    %v1813 = vpop.f32.mrf.mxu0
    %v1814 = vadd.f32 %v1677, %v1813
    %v1815 = vpop.f32.mrf.mxu0
    %1816 = vmatprep.mubr.bf16.mxu0 0
    %1817 = vmatmul.mubr.bf16.gmra.mxu0 %v1716
    %v1818 = vpop.f32.mrf.mxu0
    %v1819 = vadd.f32 %v1677, %v1818
    %v1820 = vpop.f32.mrf.mxu0
    %v1821 = vpop.f32.mrf.mxu0
    %v1822 = vadd.f32 %v1677, %v1821
    %v1823 = vpop.f32.mrf.mxu0
    %1824 = vmatprep.mubr.bf16.mxu0 0
    %1825 = vmatmul.mubr.bf16.gmra.mxu0 %v1719
    %v1826 = vpop.f32.mrf.mxu0
    %v1827 = vadd.f32 %v1677, %v1826
    %v1828 = vpop.f32.mrf.mxu0
    %v1829 = vpop.f32.mrf.mxu0
    %v1830 = vadd.f32 %v1677, %v1829
    %v1831 = vpop.f32.mrf.mxu0
    %1832 = vmatprep.mubr.bf16.mxu0 0
    %1833 = vmatmul.mubr.bf16.gmra.mxu0 %v1722
    %v1834 = vpop.f32.mrf.mxu0
    %v1835 = vadd.f32 %v1677, %v1834
    %v1836 = vpop.f32.mrf.mxu0
    %v1837 = vpop.f32.mrf.mxu0
    %v1838 = vadd.f32 %v1677, %v1837
    %v1839 = vpop.f32.mrf.mxu0
    %1840 = vmatprep.mubr.bf16.mxu0 0
    %1841 = vmatmul.mubr.bf16.gmra.mxu0 %v1725
    %v1842 = vpop.f32.mrf.mxu0
    %v1843 = vadd.f32 %v1677, %v1842
    %v1844 = vpop.f32.mrf.mxu0
    %v1845 = vpop.f32.mrf.mxu0
    %v1846 = vadd.f32 %v1677, %v1845
    %v1847 = vpop.f32.mrf.mxu0
    %1848 = vmatprep.mubr.bf16.mxu0 0
    %1849 = vmatmul.mubr.bf16.gmra.mxu0 %v1728
    %v1850 = vpop.f32.mrf.mxu0
    %v1851 = vadd.f32 %v1677, %v1850
    %v1852 = vpop.f32.mrf.mxu0
    %v1853 = vpop.f32.mrf.mxu0
    %v1854 = vadd.f32 %v1677, %v1853
    %v1855 = vpop.f32.mrf.mxu0
    %1856 = vmatprep.mubr.bf16.mxu0 0
    %1857 = vmatmul.mubr.bf16.gmra.mxu0 %v1731
    %v1858 = vpop.f32.mrf.mxu0
    %v1859 = vadd.f32 %v1677, %v1858
    %v1860 = vpop.f32.mrf.mxu0
    %v1861 = vpop.f32.mrf.mxu0
    %v1862 = vadd.f32 %v1677, %v1861
    %v1863 = vpop.f32.mrf.mxu0
    %1864 = vmatprep.mubr.bf16.mxu0 0
    %1865 = vmatmul.mubr.bf16.gmra.mxu0 %v1734
    %v1866 = vpop.f32.mrf.mxu0
    %v1867 = vadd.f32 %v1677, %v1866
    %v1868 = vpop.f32.mrf.mxu0
    %v1869 = vpop.f32.mrf.mxu0
    %v1870 = vpop.f32.mrf.mxu0
    %1871 = vdwg.mxu0
    %v1872 = vmax.f32 %v1771, 0.0
    %v1873 = vmax.f32 %v1774, 0.0
    %v1874 = vmax.f32 %v1779, 0.0
    %v1875 = vmax.f32 %v1782, 0.0
    %v1876 = vmax.f32 %v1787, 0.0
    %v1877 = vmax.f32 %v1790, 0.0
    %v1878 = vmax.f32 %v1795, 0.0
    %v1879 = vmax.f32 %v1798, 0.0
    %v1880 = vmax.f32 %v1803, 0.0
    %v1881 = vmax.f32 %v1806, 0.0
    %v1882 = vmax.f32 %v1811, 0.0
    %v1883 = vmax.f32 %v1814, 0.0
    %v1884 = vmax.f32 %v1819, 0.0
    %v1885 = vmax.f32 %v1822, 0.0
    %v1886 = vmax.f32 %v1827, 0.0
    %v1887 = vmax.f32 %v1830, 0.0
    %v1888 = vmax.f32 %v1835, 0.0
    %v1889 = vmax.f32 %v1838, 0.0
    %v1890 = vmax.f32 %v1843, 0.0
    %v1891 = vmax.f32 %v1846, 0.0
    %v1892 = vmax.f32 %v1851, 0.0
    %v1893 = vmax.f32 %v1854, 0.0
    %v1894 = vmax.f32 %v1859, 0.0
    %v1895 = vmax.f32 %v1862, 0.0
    %v1896 = vmax.f32 %v1867, 0.0
    %vm1897 = vcmask 64512
    %1898 = vst.msk [vmem:[%s3] sm:$0xff] %vm1897, %v1872
    %1899 = vst.msk [vmem:[%s3 + $0x8] sm:$0xff] %vm1897, %v1873
    %1900 = vst.msk [vmem:[%s3 + $0x10] sm:$0xff] %vm1897, %v1874
    %1901 = vst.msk [vmem:[%s3 + $0x18] sm:$0xff] %vm1897, %v1875
    %1902 = vst.msk [vmem:[%s3 + $0x20] sm:$0xff] %vm1897, %v1876
    %1903 = vst.msk [vmem:[%s3 + $0x28] sm:$0xff] %vm1897, %v1877
    %1904 = vst.msk [vmem:[%s3 + $0x30] sm:$0xff] %vm1897, %v1878
    %1905 = vst.msk [vmem:[%s3 + $0x38] sm:$0xff] %vm1897, %v1879
    %1906 = vst.msk [vmem:[%s3 + $0x40] sm:$0xff] %vm1897, %v1880
    %1907 = vst.msk [vmem:[%s3 + $0x48] sm:$0xff] %vm1897, %v1881
    %1908 = vst.msk [vmem:[%s3 + $0x50] sm:$0xff] %vm1897, %v1882
    %1909 = vst.msk [vmem:[%s3 + $0x58] sm:$0xff] %vm1897, %v1883
    %1910 = vst.msk [vmem:[%s3 + $0x60] sm:$0xff] %vm1897, %v1884
    %1911 = vst.msk [vmem:[%s3 + $0x68] sm:$0xff] %vm1897, %v1885
    %1912 = vst.msk [vmem:[%s3 + $0x70] sm:$0xff] %vm1897, %v1886
    %1913 = vst.msk [vmem:[%s3 + $0x78] sm:$0xff] %vm1897, %v1887
    %1914 = vst.msk [vmem:[%s3 + $0x80] sm:$0xff] %vm1897, %v1888
    %1915 = vst.msk [vmem:[%s3 + $0x88] sm:$0xff] %vm1897, %v1889
    %1916 = vst.msk [vmem:[%s3 + $0x90] sm:$0xff] %vm1897, %v1890
    %1917 = vst.msk [vmem:[%s3 + $0x98] sm:$0xff] %vm1897, %v1891
    %1918 = vst.msk [vmem:[%s3 + $0xa0] sm:$0xff] %vm1897, %v1892
    %1919 = vst.msk [vmem:[%s3 + $0xa8] sm:$0xff] %vm1897, %v1893
    %1920 = vst.msk [vmem:[%s3 + $0xb0] sm:$0xff] %vm1897, %v1894
    %1921 = vst.msk [vmem:[%s3 + $0xb8] sm:$0xff] %vm1897, %v1895
    %1922 = vst.msk [vmem:[%s3 + $0xc0] sm:$0xff] %vm1897, %v1896
    // Predicated region
    $region18: #{tpu_custom_call.1} parent=1 // pred_check
      _
    $region19: #{tpu_custom_call.1} parent=1 // pred_check_branch
      %1924 = sbr.rel (0) target = $region21
    $region20: #{tpu_custom_call.1} parent=1 // pred_region
      _
    $region21: #{tpu_custom_call.1} parent=1 // pred_fallthru
      _
    // Predicated region
    $region22: #{tpu_custom_call.1} parent=1 // pred_check
      _
    $region23: #{tpu_custom_call.1} parent=1 // pred_check_branch
      %1926 = sbr.rel (0) target = $region25
    $region24: #{tpu_custom_call.1} parent=1 // pred_region
      _
    $region25: #{tpu_custom_call.1} parent=1 // pred_fallthru
      _
    %1927 = vsyncpa [#allocation3], 1

</llo_original>
